<compile_context>
chip_gen: v6e
topology: v6e:2x2x1
jax: 0.10.0
libtpu: 0.0.40
codegen_flags: <defaults>
</compile_context>

<pallas_src>
import functools

import jax
import jax.numpy as jnp
from jax.experimental import pallas as pl
from jax.experimental.pallas import tpu as pltpu  # noqa: F401  (TPU backend)

LANE = 128
SUBLANE = 8


def _round_up(x, m):
    return ((x + m - 1) // m) * m


def _pad2d(a, rows, cols):
    r, c = a.shape
    return jnp.pad(a, ((0, rows - r), (0, cols - c)))


def _full_spec(shape):
    # Whole-array block, no grid (everything fits comfortably in VMEM here).
    return pl.BlockSpec(shape, lambda: (0,) * len(shape))


# ----------------------------- Fused Pallas kernel ---------------------------

def gin_fused_kernel(a_ref, p_ref, x_ref,
                     prew_ref, preb_ref,
                     w1s_ref, b1s_ref, w2s_ref, b2s_ref,
                     postw_ref, postb_ref,
                     row_ref, rob_ref,
                     o_ref, *, nlayer, nclass):
    f32 = jnp.float32

    # pre: Linear(nfeat, nhid)
    x = jnp.dot(x_ref[...], prew_ref[...], preferred_element_type=f32) + preb_ref[...]

    a = a_ref[...]  # A_hat = A + I, padded rows/cols are zero
    # GINConv layers (statically unrolled; outer F.relu fused; dropout = identity)
    for l in range(nlayer):
        agg = jnp.dot(a, x, preferred_element_type=f32)              # (1+eps)x + sum_j x_j
        h = jnp.dot(agg, w1s_ref[l], preferred_element_type=f32) + b1s_ref[l]
        h = jnp.maximum(h, 0.0)
        h = jnp.dot(h, w2s_ref[l], preferred_element_type=f32) + b2s_ref[l]
        x = jnp.maximum(h, 0.0)                                      # F.relu in model loop

    # global_add_pool: P @ x  (P one-hot, zero on padded nodes/graphs)
    g = jnp.dot(p_ref[...], x, preferred_element_type=f32)

    # post: Linear + ReLU
    g = jnp.dot(g, postw_ref[...], preferred_element_type=f32) + postb_ref[...]
    g = jnp.maximum(g, 0.0)

    # readout: Linear, then log_softmax over the first nclass lanes only
    y = jnp.dot(g, row_ref[...], preferred_element_type=f32) + rob_ref[...]
    col = jax.lax.broadcasted_iota(jnp.int32, y.shape, 1)
    valid = col < nclass
    ym = jnp.where(valid, y, jnp.float32(-1e30))
    m = jnp.max(ym, axis=-1, keepdims=True)
    z = ym - m
    lse = jnp.log(jnp.sum(jnp.where(valid, jnp.exp(z), 0.0), axis=-1, keepdims=True))
    o_ref[...] = z - lse


# ------------------------------ Model wrapper --------------------------------

def init_linear_params(key, fan_in, fan_out):
    # PyTorch-style uniform(-1/sqrt(fan_in), 1/sqrt(fan_in)); weight stored as [in, out].
    kw, kb = jax.random.split(key)
    bound = 1.0 / (fan_in ** 0.5)
    w = jax.random.uniform(kw, (fan_in, fan_out), jnp.float32, -bound, bound)
    b = jax.random.uniform(kb, (fan_out,), jnp.float32, -bound, bound)
    return w, b


def init_gin_params(key, nfeat, nhid, nclass, nlayer):
    keys = jax.random.split(key, 2 * nlayer + 3)
    params = {}
    params["pre_w"], params["pre_b"] = init_linear_params(keys[0], nfeat, nhid)
    convs = []
    for l in range(nlayer):
        w1, b1 = init_linear_params(keys[1 + 2 * l], nhid, nhid)
        w2, b2 = init_linear_params(keys[2 + 2 * l], nhid, nhid)
        convs.append({"w1": w1, "b1": b1, "w2": w2, "b2": b2})
    params["convs"] = convs
    params["post_w"], params["post_b"] = init_linear_params(keys[2 * nlayer + 1], nhid, nhid)
    params["ro_w"], params["ro_b"] = init_linear_params(keys[2 * nlayer + 2], nhid, nclass)
    return params


def pack_params(params):
    """Zero-pad all weights to lane-dense (multiple-of-128) shapes and stack the
    per-layer conv weights so the kernel can index them with a static layer id."""
    nfeat, nhid = params["pre_w"].shape
    nclass = params["ro_w"].shape[1]
    F_pad = _round_up(nfeat, LANE)
    H_pad = _round_up(nhid, LANE)
    C_pad = _round_up(nclass, LANE)
    packed = {
        "pre_w": _pad2d(params["pre_w"], F_pad, H_pad),
        "pre_b": _pad2d(params["pre_b"].reshape(1, -1), 1, H_pad),
        "w1s": jnp.stack([_pad2d(c["w1"], H_pad, H_pad) for c in params["convs"]]),
        "b1s": jnp.stack([_pad2d(c["b1"].reshape(1, -1), 1, H_pad) for c in params["convs"]]),
        "w2s": jnp.stack([_pad2d(c["w2"], H_pad, H_pad) for c in params["convs"]]),
        "b2s": jnp.stack([_pad2d(c["b2"].reshape(1, -1), 1, H_pad) for c in params["convs"]]),
        "post_w": _pad2d(params["post_w"], H_pad, H_pad),
        "post_b": _pad2d(params["post_b"].reshape(1, -1), 1, H_pad),
        "ro_w": _pad2d(params["ro_w"], H_pad, C_pad),
        "ro_b": _pad2d(params["ro_b"].reshape(1, -1), 1, C_pad),
    }
    return packed


def gin_forward(packed, x, a_hat, pool_mat, *, nclass):
    N, _ = x.shape
    G = pool_mat.shape[0]
    nlayer = packed["w1s"].shape[0]
    F_pad = packed["pre_w"].shape[0]
    H_pad = packed["pre_w"].shape[1]
    C_pad = packed["ro_w"].shape[1]
    N_pad = _round_up(max(N, SUBLANE), LANE)   # lane-dense contraction dim for A@x and pooling
    G_pad = _round_up(max(G, 1), SUBLANE)

    x_p = _pad2d(x.astype(jnp.float32), N_pad, F_pad)
    a_p = _pad2d(a_hat.astype(jnp.float32), N_pad, N_pad)
    p_p = _pad2d(pool_mat.astype(jnp.float32), G_pad, N_pad)

    kernel = functools.partial(gin_fused_kernel, nlayer=nlayer, nclass=nclass)
    out = pl.pallas_call(
        kernel,
        out_shape=jax.ShapeDtypeStruct((G_pad, C_pad), jnp.float32),
        in_specs=[
            _full_spec((N_pad, N_pad)),           # A_hat
            _full_spec((G_pad, N_pad)),           # pooling matrix
            _full_spec((N_pad, F_pad)),           # node features
            _full_spec((F_pad, H_pad)),           # pre W
            _full_spec((1, H_pad)),               # pre b
            _full_spec((nlayer, H_pad, H_pad)),   # conv W1 stack
            _full_spec((nlayer, 1, H_pad)),       # conv b1 stack
            _full_spec((nlayer, H_pad, H_pad)),   # conv W2 stack
            _full_spec((nlayer, 1, H_pad)),       # conv b2 stack
            _full_spec((H_pad, H_pad)),           # post W
            _full_spec((1, H_pad)),               # post b
            _full_spec((H_pad, C_pad)),           # readout W
            _full_spec((1, C_pad)),               # readout b
        ],
        out_specs=_full_spec((G_pad, C_pad)),
    )(a_p, p_p, x_p,
      packed["pre_w"], packed["pre_b"],
      packed["w1s"], packed["b1s"], packed["w2s"], packed["b2s"],
      packed["post_w"], packed["post_b"],
      packed["ro_w"], packed["ro_b"])
    return out[:G, :nclass]


# --------------------------------- Demo --------------------------------------

if __name__ == "__main__":
    nfeat, nhid, nclass, nlayer = 8, 32, 4, 2
    num_nodes, num_edges, num_graphs = 16, 40, 2

    key = jax.random.PRNGKey(0)
    k_x, k_e, k_p = jax.random.split(key, 3)

    # Graph data: node features, random edge_index, batch assignment.
    x = jax.random.normal(k_x, (num_nodes, nfeat), jnp.float32)
    src = jax.random.randint(k_e, (num_edges,), 0, num_nodes)
    dst = jax.random.randint(jax.random.fold_in(k_e, 1), (num_edges,), 0, num_nodes)
    batch = jnp.concatenate(
        [jnp.zeros(num_nodes // 2, jnp.int32), jnp.ones(num_nodes - num_nodes // 2, jnp.int32)]
    )

    # Dense adjacency with self-term: A_hat[dst, src] += 1, plus identity (eps = 0).
    a_hat = (
        jnp.zeros((num_nodes, num_nodes), jnp.float32).at[dst, src].add(1.0)
        + jnp.eye(num_nodes, dtype=jnp.float32)
    )
    # One-hot pooling matrix: pool_mat[g, n] = 1 iff batch[n] == g.
    pool_mat = (batch[None, :] == jnp.arange(num_graphs)[:, None]).astype(jnp.float32)

    params = init_gin_params(k_p, nfeat, nhid, nclass, nlayer)
    packed = pack_params(params)

    fwd = jax.jit(functools.partial(gin_forward, nclass=nclass))
    out = fwd(packed, x, a_hat, pool_mat)
    out = jax.block_until_ready(out)

    assert out.shape == (num_graphs, nclass)
    # log_softmax rows should (approximately) exp-sum to 1
    assert bool(jnp.all(jnp.abs(jnp.sum(jnp.exp(out), axis=1) - 1.0) < 1e-4))
    print("KERNEL_OK")
</pallas_src>

<mosaic_0001>
module attributes {stable_mosaic.version = 11 : i64} {
  func.func @gin_fused_kernel(%arg0: memref<128x128xf32, #tpu.memory_space<vmem>>, %arg1: memref<8x128xf32, #tpu.memory_space<vmem>>, %arg2: memref<128x128xf32, #tpu.memory_space<vmem>>, %arg3: memref<128x128xf32, #tpu.memory_space<vmem>>, %arg4: memref<1x128xf32, #tpu.memory_space<vmem>>, %arg5: memref<2x128x128xf32, #tpu.memory_space<vmem>>, %arg6: memref<2x1x128xf32, #tpu.memory_space<vmem>>, %arg7: memref<2x128x128xf32, #tpu.memory_space<vmem>>, %arg8: memref<2x1x128xf32, #tpu.memory_space<vmem>>, %arg9: memref<128x128xf32, #tpu.memory_space<vmem>>, %arg10: memref<1x128xf32, #tpu.memory_space<vmem>>, %arg11: memref<128x128xf32, #tpu.memory_space<vmem>>, %arg12: memref<1x128xf32, #tpu.memory_space<vmem>>, %arg13: memref<8x128xf32, #tpu.memory_space<vmem>>) attributes {dimension_semantics = [], scalar_prefetch = 0 : i64, scratch_operands = 0 : i64, tpu.core_type = #tpu.core_type<tc>} {
    %c0 = arith.constant 0 : index
    %c0_0 = arith.constant 0 : index
    %0 = vector.load %arg2[%c0, %c0_0] : memref<128x128xf32, #tpu.memory_space<vmem>>, vector<128x128xf32>
    %c0_1 = arith.constant 0 : index
    %c0_2 = arith.constant 0 : index
    %1 = vector.load %arg3[%c0_1, %c0_2] : memref<128x128xf32, #tpu.memory_space<vmem>>, vector<128x128xf32>
    %cst = arith.constant dense<0.000000e+00> : vector<128x128xf32>
    %2 = tpu.matmul %0, %1, %cst {dimension_numbers = #tpu.dot_dimension_numbers<[1], [0], [0], [1], [0, 0, 1, 1], [], []>} : vector<128x128xf32>, vector<128x128xf32>, vector<128x128xf32> -> vector<128x128xf32>
    %c0_3 = arith.constant 0 : index
    %c0_4 = arith.constant 0 : index
    %3 = vector.load %arg4[%c0_3, %c0_4] : memref<1x128xf32, #tpu.memory_space<vmem>>, vector<1x128xf32>
    %4 = vector.broadcast %3 : vector<1x128xf32> to vector<128x128xf32>
    %5 = arith.addf %2, %4 : vector<128x128xf32>
    %c0_5 = arith.constant 0 : index
    %c0_6 = arith.constant 0 : index
    %6 = vector.load %arg0[%c0_5, %c0_6] : memref<128x128xf32, #tpu.memory_space<vmem>>, vector<128x128xf32>
    %cst_7 = arith.constant dense<0.000000e+00> : vector<128x128xf32>
    %7 = tpu.matmul %6, %5, %cst_7 {dimension_numbers = #tpu.dot_dimension_numbers<[1], [0], [0], [1], [0, 0, 1, 1], [], []>} : vector<128x128xf32>, vector<128x128xf32>, vector<128x128xf32> -> vector<128x128xf32>
    %c0_8 = arith.constant 0 : index
    %c0_9 = arith.constant 0 : index
    %c0_10 = arith.constant 0 : index
    %8 = vector.load %arg5[%c0_8, %c0_9, %c0_10] : memref<2x128x128xf32, #tpu.memory_space<vmem>>, vector<1x128x128xf32>
    %9 = vector.shape_cast %8 : vector<1x128x128xf32> to vector<128x128xf32>
    %cst_11 = arith.constant dense<0.000000e+00> : vector<128x128xf32>
    %10 = tpu.matmul %7, %9, %cst_11 {dimension_numbers = #tpu.dot_dimension_numbers<[1], [0], [0], [1], [0, 0, 1, 1], [], []>} : vector<128x128xf32>, vector<128x128xf32>, vector<128x128xf32> -> vector<128x128xf32>
    %c0_12 = arith.constant 0 : index
    %c0_13 = arith.constant 0 : index
    %c0_14 = arith.constant 0 : index
    %11 = vector.load %arg6[%c0_12, %c0_13, %c0_14] : memref<2x1x128xf32, #tpu.memory_space<vmem>>, vector<1x1x128xf32>
    %12 = vector.shape_cast %11 : vector<1x1x128xf32> to vector<1x128xf32>
    %13 = vector.broadcast %12 : vector<1x128xf32> to vector<128x128xf32>
    %14 = arith.addf %10, %13 : vector<128x128xf32>
    %cst_15 = arith.constant 0.000000e+00 : f32
    %15 = vector.broadcast %cst_15 : f32 to vector<128x128xf32>
    %16 = arith.maximumf %14, %15 : vector<128x128xf32>
    %c0_16 = arith.constant 0 : index
    %c0_17 = arith.constant 0 : index
    %c0_18 = arith.constant 0 : index
    %17 = vector.load %arg7[%c0_16, %c0_17, %c0_18] : memref<2x128x128xf32, #tpu.memory_space<vmem>>, vector<1x128x128xf32>
    %18 = vector.shape_cast %17 : vector<1x128x128xf32> to vector<128x128xf32>
    %cst_19 = arith.constant dense<0.000000e+00> : vector<128x128xf32>
    %19 = tpu.matmul %16, %18, %cst_19 {dimension_numbers = #tpu.dot_dimension_numbers<[1], [0], [0], [1], [0, 0, 1, 1], [], []>} : vector<128x128xf32>, vector<128x128xf32>, vector<128x128xf32> -> vector<128x128xf32>
    %c0_20 = arith.constant 0 : index
    %c0_21 = arith.constant 0 : index
    %c0_22 = arith.constant 0 : index
    %20 = vector.load %arg8[%c0_20, %c0_21, %c0_22] : memref<2x1x128xf32, #tpu.memory_space<vmem>>, vector<1x1x128xf32>
    %21 = vector.shape_cast %20 : vector<1x1x128xf32> to vector<1x128xf32>
    %22 = vector.broadcast %21 : vector<1x128xf32> to vector<128x128xf32>
    %23 = arith.addf %19, %22 : vector<128x128xf32>
    %cst_23 = arith.constant 0.000000e+00 : f32
    %24 = vector.broadcast %cst_23 : f32 to vector<128x128xf32>
    %25 = arith.maximumf %23, %24 : vector<128x128xf32>
    %cst_24 = arith.constant dense<0.000000e+00> : vector<128x128xf32>
    %26 = tpu.matmul %6, %25, %cst_24 {dimension_numbers = #tpu.dot_dimension_numbers<[1], [0], [0], [1], [0, 0, 1, 1], [], []>} : vector<128x128xf32>, vector<128x128xf32>, vector<128x128xf32> -> vector<128x128xf32>
    %c1 = arith.constant 1 : index
    %c0_25 = arith.constant 0 : index
    %c0_26 = arith.constant 0 : index
    %27 = vector.load %arg5[%c1, %c0_25, %c0_26] : memref<2x128x128xf32, #tpu.memory_space<vmem>>, vector<1x128x128xf32>
    %28 = vector.shape_cast %27 : vector<1x128x128xf32> to vector<128x128xf32>
    %cst_27 = arith.constant dense<0.000000e+00> : vector<128x128xf32>
    %29 = tpu.matmul %26, %28, %cst_27 {dimension_numbers = #tpu.dot_dimension_numbers<[1], [0], [0], [1], [0, 0, 1, 1], [], []>} : vector<128x128xf32>, vector<128x128xf32>, vector<128x128xf32> -> vector<128x128xf32>
    %c1_28 = arith.constant 1 : index
    %c0_29 = arith.constant 0 : index
    %c0_30 = arith.constant 0 : index
    %30 = vector.load %arg6[%c1_28, %c0_29, %c0_30] : memref<2x1x128xf32, #tpu.memory_space<vmem>>, vector<1x1x128xf32>
    %31 = vector.shape_cast %30 : vector<1x1x128xf32> to vector<1x128xf32>
    %32 = vector.broadcast %31 : vector<1x128xf32> to vector<128x128xf32>
    %33 = arith.addf %29, %32 : vector<128x128xf32>
    %cst_31 = arith.constant 0.000000e+00 : f32
    %34 = vector.broadcast %cst_31 : f32 to vector<128x128xf32>
    %35 = arith.maximumf %33, %34 : vector<128x128xf32>
    %c1_32 = arith.constant 1 : index
    %c0_33 = arith.constant 0 : index
    %c0_34 = arith.constant 0 : index
    %36 = vector.load %arg7[%c1_32, %c0_33, %c0_34] : memref<2x128x128xf32, #tpu.memory_space<vmem>>, vector<1x128x128xf32>
    %37 = vector.shape_cast %36 : vector<1x128x128xf32> to vector<128x128xf32>
    %cst_35 = arith.constant dense<0.000000e+00> : vector<128x128xf32>
    %38 = tpu.matmul %35, %37, %cst_35 {dimension_numbers = #tpu.dot_dimension_numbers<[1], [0], [0], [1], [0, 0, 1, 1], [], []>} : vector<128x128xf32>, vector<128x128xf32>, vector<128x128xf32> -> vector<128x128xf32>
    %c1_36 = arith.constant 1 : index
    %c0_37 = arith.constant 0 : index
    %c0_38 = arith.constant 0 : index
    %39 = vector.load %arg8[%c1_36, %c0_37, %c0_38] : memref<2x1x128xf32, #tpu.memory_space<vmem>>, vector<1x1x128xf32>
    %40 = vector.shape_cast %39 : vector<1x1x128xf32> to vector<1x128xf32>
    %41 = vector.broadcast %40 : vector<1x128xf32> to vector<128x128xf32>
    %42 = arith.addf %38, %41 : vector<128x128xf32>
    %cst_39 = arith.constant 0.000000e+00 : f32
    %43 = vector.broadcast %cst_39 : f32 to vector<128x128xf32>
    %44 = arith.maximumf %42, %43 : vector<128x128xf32>
    %c0_40 = arith.constant 0 : index
    %c0_41 = arith.constant 0 : index
    %45 = vector.load %arg1[%c0_40, %c0_41] : memref<8x128xf32, #tpu.memory_space<vmem>>, vector<8x128xf32>
    %cst_42 = arith.constant dense<0.000000e+00> : vector<8x128xf32>
    %46 = tpu.matmul %45, %44, %cst_42 {dimension_numbers = #tpu.dot_dimension_numbers<[1], [0], [0], [1], [0, 0, 1, 1], [], []>} : vector<8x128xf32>, vector<128x128xf32>, vector<8x128xf32> -> vector<8x128xf32>
    %c0_43 = arith.constant 0 : index
    %c0_44 = arith.constant 0 : index
    %47 = vector.load %arg9[%c0_43, %c0_44] : memref<128x128xf32, #tpu.memory_space<vmem>>, vector<128x128xf32>
    %cst_45 = arith.constant dense<0.000000e+00> : vector<8x128xf32>
    %48 = tpu.matmul %46, %47, %cst_45 {dimension_numbers = #tpu.dot_dimension_numbers<[1], [0], [0], [1], [0, 0, 1, 1], [], []>} : vector<8x128xf32>, vector<128x128xf32>, vector<8x128xf32> -> vector<8x128xf32>
    %c0_46 = arith.constant 0 : index
    %c0_47 = arith.constant 0 : index
    %49 = vector.load %arg10[%c0_46, %c0_47] : memref<1x128xf32, #tpu.memory_space<vmem>>, vector<1x128xf32>
    %50 = vector.broadcast %49 : vector<1x128xf32> to vector<8x128xf32>
    %51 = arith.addf %48, %50 : vector<8x128xf32>
    %cst_48 = arith.constant 0.000000e+00 : f32
    %52 = vector.broadcast %cst_48 : f32 to vector<8x128xf32>
    %53 = arith.maximumf %51, %52 : vector<8x128xf32>
    %c0_49 = arith.constant 0 : index
    %c0_50 = arith.constant 0 : index
    %54 = vector.load %arg11[%c0_49, %c0_50] : memref<128x128xf32, #tpu.memory_space<vmem>>, vector<128x128xf32>
    %cst_51 = arith.constant dense<0.000000e+00> : vector<8x128xf32>
    %55 = tpu.matmul %53, %54, %cst_51 {dimension_numbers = #tpu.dot_dimension_numbers<[1], [0], [0], [1], [0, 0, 1, 1], [], []>} : vector<8x128xf32>, vector<128x128xf32>, vector<8x128xf32> -> vector<8x128xf32>
    %c0_52 = arith.constant 0 : index
    %c0_53 = arith.constant 0 : index
    %56 = vector.load %arg12[%c0_52, %c0_53] : memref<1x128xf32, #tpu.memory_space<vmem>>, vector<1x128xf32>
    %57 = vector.broadcast %56 : vector<1x128xf32> to vector<8x128xf32>
    %58 = arith.addf %55, %57 : vector<8x128xf32>
    %59 = tpu.iota {dimensions = array<i32: 1>} : vector<8x128xi32>
    %c4_i32 = arith.constant 4 : i32
    %60 = vector.broadcast %c4_i32 : i32 to vector<8x128xi32>
    %61 = arith.cmpi slt, %59, %60 : vector<8x128xi32>
    %cst_54 = arith.constant -1.000000e+30 : f32
    %62 = vector.broadcast %cst_54 : f32 to vector<8x128xf32>
    %63 = arith.select %61, %58, %62 : vector<8x128xi1>, vector<8x128xf32>
    %cst_55 = arith.constant dense<0xFF800000> : vector<8xf32>
    %64 = vector.multi_reduction <maximumf>, %63, %cst_55 [1] : vector<8x128xf32> to vector<8xf32>
    %65 = vector.shape_cast %64 : vector<8xf32> to vector<8x1xf32>
    %66 = vector.broadcast %65 : vector<8x1xf32> to vector<8x128xf32>
    %67 = arith.subf %63, %66 : vector<8x128xf32>
    %68 = math.exp %67 : vector<8x128xf32>
    %cst_56 = arith.constant 0.000000e+00 : f32
    %69 = vector.broadcast %cst_56 : f32 to vector<8x128xf32>
    %70 = arith.select %61, %68, %69 : vector<8x128xi1>, vector<8x128xf32>
    %cst_57 = arith.constant dense<0.000000e+00> : vector<8xf32>
    %71 = vector.multi_reduction <add>, %70, %cst_57 [1] : vector<8x128xf32> to vector<8xf32>
    %72 = vector.shape_cast %71 : vector<8xf32> to vector<8x1xf32>
    %73 = math.log %72 : vector<8x1xf32>
    %74 = vector.broadcast %73 : vector<8x1xf32> to vector<8x128xf32>
    %75 = arith.subf %67, %74 : vector<8x128xf32>
    %c0_58 = arith.constant 0 : index
    %c0_59 = arith.constant 0 : index
    %76 = vector.load %arg13[%c0_58, %c0_59] : memref<8x128xf32, #tpu.memory_space<vmem>>, vector<8x128xf32>
    tpu.vector_store %arg13[%c0_58, %c0_59], %75 {strides = array<i32>} : memref<8x128xf32, #tpu.memory_space<vmem>>, vector<8x128xf32>,
    return
  }
}

</mosaic_0001>

<llo_original>
// kernel: gin_forward.1
$region0: #{gin_forward.1}
  #allocation0 [shape = 'u32[]', space=smem, size = 0x4, offset = 0x4, fixed_abs, tag = 'smem constant byte address 0x4 - core index']
  #allocation1 [shape = 'u32[144,128]{1,0:T(1,128)}', space=vmem, size = 0x12000, scoped, tag = 'internal scratch']
  %s0 = inlined_call_operand.vmem [shape: f32[128,128], index: 0, kind: input, shape index: {}]
  %s1 = inlined_call_operand.vmem [shape: f32[8,128], index: 1, kind: input, shape index: {}]
  %s2 = inlined_call_operand.vmem [shape: f32[128,128], index: 2, kind: input, shape index: {}]
  %s3 = inlined_call_operand.hbm [shape: f32[128,128], index: 3, kind: input, shape index: {}]
  %s4 = inlined_call_operand.vmem [shape: f32[1,128], index: 4, kind: input, shape index: {}]
  %s5 = inlined_call_operand.vmem [shape: f32[2,128,128], index: 5, kind: input, shape index: {}]
  %s6 = inlined_call_operand.vmem [shape: f32[2,1,128], index: 6, kind: input, shape index: {}]
  %s7 = inlined_call_operand.hbm [shape: f32[2,128,128], index: 7, kind: input, shape index: {}]
  %s8 = inlined_call_operand.vmem [shape: f32[2,1,128], index: 8, kind: input, shape index: {}]
  %s9 = inlined_call_operand.hbm [shape: f32[128,128], index: 9, kind: input, shape index: {}]
  %s10 = inlined_call_operand.vmem [shape: f32[1,128], index: 10, kind: input, shape index: {}]
  %s11 = inlined_call_operand.hbm [shape: f32[128,128], index: 11, kind: input, shape index: {}]
  %s12 = inlined_call_operand.vmem [shape: f32[1,128], index: 12, kind: input, shape index: {}]
  %s13 = inlined_call_operand.vmem [shape: f32[8,128], index: 13, kind: output, shape index: {}]
  %s14 = sld [smem:[#allocation0]]
  $region78: #{gin_forward.1} parent=0
    _
  %s16 = ssub.s32 1, %s14
  %s17 = scalar_select 0, %s16, %s14
  $region1: #{gin_forward.1} parent=0
    #allocation2 [shape = 'u8[65536]{0}', space=vmem, size = 0x10000, scoped, tag = 'input window, operand 3, single buffered']
    #allocation3 [shape = 's32[1]{0}', space=sflag, size = 0x4, scoped, tag = 'scoped memory for gin_forward.1']
    #allocation4 [shape = 'u8[131072]{0}', space=vmem, size = 0x20000, scoped, tag = 'input window, operand 7, single buffered']
    #allocation5 [shape = 's32[1]{0}', space=sflag, size = 0x4, scoped, tag = 'scoped memory for gin_forward.1']
    #allocation6 [shape = 'u8[65536]{0}', space=vmem, size = 0x10000, scoped, tag = 'input window, operand 9, single buffered']
    #allocation7 [shape = 'u8[65536]{0}', space=vmem, size = 0x10000, scoped, tag = 'input window, operand 11, single buffered']
    #allocation8 [shape = 's32[1]{0}', space=sflag, size = 0x4, scoped, tag = 'scoped memory for gin_forward.1']
    %18 = vsyncpa [#allocation3], 0
    %19 = vsyncpa [#allocation5], 0
    %20 = vsyncpa [#allocation8], 0
    // Predicated region
    $region2: #{gin_forward.1} parent=1 // pred_check
      _
    $region3: #{gin_forward.1} parent=1 // pred_check_branch
      %22 = sbr.rel (0) target = $region5
    $region4: #{gin_forward.1} parent=1 // pred_region
      _
    $region5: #{gin_forward.1} parent=1 // pred_fallthru
      _
    // Predicated region
    $region6: #{gin_forward.1} parent=1 // pred_check
      _
    $region7: #{gin_forward.1} parent=1 // pred_check_branch
      %24 = sbr.rel (0) target = $region9
    $region8: #{gin_forward.1} parent=1 // pred_region
      _
    $region9: #{gin_forward.1} parent=1 // pred_fallthru
      _
    // Predicated region
    $region10: #{gin_forward.1} parent=1 // pred_check
      _
    $region11: #{gin_forward.1} parent=1 // pred_check_branch
      %26 = sbr.rel (0) target = $region13
    $region12: #{gin_forward.1} parent=1 // pred_region
      _
    $region13: #{gin_forward.1} parent=1 // pred_fallthru
      _
    // Predicated region
    $region14: #{gin_forward.1} parent=1 // pred_check
      _
    $region15: #{gin_forward.1} parent=1 // pred_check_branch
      %28 = sbr.rel (0) target = $region17
    $region16: #{gin_forward.1} parent=1 // pred_region
      %s30 = ssub.s32 2048, 2048
      %31 = vsyncadd [#allocation3], %s30
      %s32 = sshll.u32 [#allocation2], 4
      %s33 = int_to_ptr.vmem [resolvable:$true] %s32
      %38 = dma.hbm_to_vmem [thread:$0]  %s3, 2048, %s33, [#allocation3], 128, 128, 8
    $region17: #{gin_forward.1} parent=1 // pred_fallthru
      _
    // Predicated region
    $region18: #{gin_forward.1} parent=1 // pred_check
      _
    $region19: #{gin_forward.1} parent=1 // pred_check_branch
      %40 = sbr.rel (0) target = $region21
    $region20: #{gin_forward.1} parent=1 // pred_region
      _
    $region21: #{gin_forward.1} parent=1 // pred_fallthru
      _
    // Predicated region
    $region22: #{gin_forward.1} parent=1 // pred_check
      _
    $region23: #{gin_forward.1} parent=1 // pred_check_branch
      %42 = sbr.rel (0) target = $region25
    $region24: #{gin_forward.1} parent=1 // pred_region
      _
    $region25: #{gin_forward.1} parent=1 // pred_fallthru
      _
    // Predicated region
    $region26: #{gin_forward.1} parent=1 // pred_check
      _
    $region27: #{gin_forward.1} parent=1 // pred_check_branch
      %44 = sbr.rel (0) target = $region29
    $region28: #{gin_forward.1} parent=1 // pred_region
      _
    $region29: #{gin_forward.1} parent=1 // pred_fallthru
      _
    // Predicated region
    $region30: #{gin_forward.1} parent=1 // pred_check
      _
    $region31: #{gin_forward.1} parent=1 // pred_check_branch
      %46 = sbr.rel (0) target = $region33
    $region32: #{gin_forward.1} parent=1 // pred_region
      %s48 = ssub.s32 4096, 4096
      %49 = vsyncadd [#allocation5], %s48
      %s50 = sshll.u32 [#allocation4], 4
      %s51 = int_to_ptr.vmem [resolvable:$true] %s50
      %56 = dma.hbm_to_vmem [thread:$0]  %s7, 4096, %s51, [#allocation5], 128, 128, 8
    $region33: #{gin_forward.1} parent=1 // pred_fallthru
      _
    // Predicated region
    $region34: #{gin_forward.1} parent=1 // pred_check
      _
    $region35: #{gin_forward.1} parent=1 // pred_check_branch
      %58 = sbr.rel (0) target = $region37
    $region36: #{gin_forward.1} parent=1 // pred_region
      _
    $region37: #{gin_forward.1} parent=1 // pred_fallthru
      _
    // Predicated region
    $region38: #{gin_forward.1} parent=1 // pred_check
      _
    $region39: #{gin_forward.1} parent=1 // pred_check_branch
      %60 = sbr.rel (0) target = $region41
    $region40: #{gin_forward.1} parent=1 // pred_region
      %s62 = ssub.s32 2048, 2048
      %63 = vsyncadd [#allocation5], %s62
      %s64 = sshll.u32 [#allocation6], 4
      %s65 = int_to_ptr.vmem [resolvable:$true] %s64
      %70 = dma.hbm_to_vmem [thread:$0]  %s9, 2048, %s65, [#allocation5], 128, 128, 8
    $region41: #{gin_forward.1} parent=1 // pred_fallthru
      _
    // Predicated region
    $region42: #{gin_forward.1} parent=1 // pred_check
      _
    $region43: #{gin_forward.1} parent=1 // pred_check_branch
      %72 = sbr.rel (0) target = $region45
    $region44: #{gin_forward.1} parent=1 // pred_region
      _
    $region45: #{gin_forward.1} parent=1 // pred_fallthru
      _
    // Predicated region
    $region46: #{gin_forward.1} parent=1 // pred_check
      _
    $region47: #{gin_forward.1} parent=1 // pred_check_branch
      %74 = sbr.rel (0) target = $region49
    $region48: #{gin_forward.1} parent=1 // pred_region
      %s76 = ssub.s32 2048, 2048
      %77 = vsyncadd [#allocation8], %s76
      %s78 = sshll.u32 [#allocation7], 4
      %s79 = int_to_ptr.vmem [resolvable:$true] %s78
      %84 = dma.hbm_to_vmem [thread:$0]  %s11, 2048, %s79, [#allocation8], 128, 128, 8
    $region49: #{gin_forward.1} parent=1 // pred_fallthru
      _
    // Predicated region
    $region50: #{gin_forward.1} parent=1 // pred_check
      _
    $region51: #{gin_forward.1} parent=1 // pred_check_branch
      %86 = sbr.rel (0) target = $region53
    $region52: #{gin_forward.1} parent=1 // pred_region
      _
    $region53: #{gin_forward.1} parent=1 // pred_fallthru
      _
    // Predicated region
    $region54: #{gin_forward.1} parent=1 // pred_check
      _
    $region55: #{gin_forward.1} parent=1 // pred_check_branch
      %88 = sbr.rel (0) target = $region57
    $region56: #{gin_forward.1} parent=1 // pred_region
      %89 = dma.done [#allocation3], 2048
    $region57: #{gin_forward.1} parent=1 // pred_fallthru
      _
    // Predicated region
    $region58: #{gin_forward.1} parent=1 // pred_check
      _
    $region59: #{gin_forward.1} parent=1 // pred_check_branch
      %91 = sbr.rel (0) target = $region61
    $region60: #{gin_forward.1} parent=1 // pred_region
      %92 = dma.done [#allocation5], 4096
    $region61: #{gin_forward.1} parent=1 // pred_fallthru
      _
    // Predicated region
    $region62: #{gin_forward.1} parent=1 // pred_check
      _
    $region63: #{gin_forward.1} parent=1 // pred_check_branch
      %94 = sbr.rel (0) target = $region65
    $region64: #{gin_forward.1} parent=1 // pred_region
      %95 = dma.done [#allocation5], 2048
    $region65: #{gin_forward.1} parent=1 // pred_fallthru
      _
    // Predicated region
    $region66: #{gin_forward.1} parent=1 // pred_check
      _
    $region67: #{gin_forward.1} parent=1 // pred_check_branch
      %97 = sbr.rel (0) target = $region69
    $region68: #{gin_forward.1} parent=1 // pred_region
      %98 = dma.done [#allocation8], 2048
    $region69: #{gin_forward.1} parent=1 // pred_fallthru
      _
    %v99 = vld [vmem:[%s2] sm:$0xff]
    %v100 = vld [vmem:[%s2 + $0x8] sm:$0xff]
    %v101 = vld [vmem:[%s2 + $0x10] sm:$0xff]
    %v102 = vld [vmem:[%s2 + $0x18] sm:$0xff]
    %v103 = vld [vmem:[%s2 + $0x20] sm:$0xff]
    %v104 = vld [vmem:[%s2 + $0x28] sm:$0xff]
    %v105 = vld [vmem:[%s2 + $0x30] sm:$0xff]
    %v106 = vld [vmem:[%s2 + $0x38] sm:$0xff]
    %v107 = vld [vmem:[%s2 + $0x40] sm:$0xff]
    %v108 = vld [vmem:[%s2 + $0x48] sm:$0xff]
    %v109 = vld [vmem:[%s2 + $0x50] sm:$0xff]
    %v110 = vld [vmem:[%s2 + $0x58] sm:$0xff]
    %v111 = vld [vmem:[%s2 + $0x60] sm:$0xff]
    %v112 = vld [vmem:[%s2 + $0x68] sm:$0xff]
    %v113 = vld [vmem:[%s2 + $0x70] sm:$0xff]
    %v114 = vld [vmem:[%s2 + $0x78] sm:$0xff]
    %v115 = vld [vmem:[#allocation2] sm:$0xff]
    %v116 = vld [vmem:[#allocation2 + $0x8] sm:$0xff]
    %v117 = vld [vmem:[#allocation2 + $0x10] sm:$0xff]
    %v118 = vld [vmem:[#allocation2 + $0x18] sm:$0xff]
    %v119 = vld [vmem:[#allocation2 + $0x20] sm:$0xff]
    %v120 = vld [vmem:[#allocation2 + $0x28] sm:$0xff]
    %v121 = vld [vmem:[#allocation2 + $0x30] sm:$0xff]
    %v122 = vld [vmem:[#allocation2 + $0x38] sm:$0xff]
    %v123 = vld [vmem:[#allocation2 + $0x40] sm:$0xff]
    %v124 = vld [vmem:[#allocation2 + $0x48] sm:$0xff]
    %v125 = vld [vmem:[#allocation2 + $0x50] sm:$0xff]
    %v126 = vld [vmem:[#allocation2 + $0x58] sm:$0xff]
    %v127 = vld [vmem:[#allocation2 + $0x60] sm:$0xff]
    %v128 = vld [vmem:[#allocation2 + $0x68] sm:$0xff]
    %v129 = vld [vmem:[#allocation2 + $0x70] sm:$0xff]
    %v130 = vld [vmem:[#allocation2 + $0x78] sm:$0xff]
    %v131 = vld [vmem:[%s4] sm:$0x1]
    %v133 = vlaneseq
    %v134 = vshrl.u32 %v133, 7
    %v135 = vsub.s32 0, %v134
    %v136 = vrot.slane %v131, %v135
    %138 = vmatprep.subr.mxu0 0.0
    %139 = vmatpush1.msra.mxu0 %v130
    %140 = vmatprep.subr.mxu0 0.0
    %141 = vmatpush1.msra.mxu0 %v129
    %142 = vmatprep.subr.mxu0 0.0
    %143 = vmatpush1.msra.mxu0 %v128
    %144 = vmatprep.subr.mxu0 0.0
    %145 = vmatpush1.msra.mxu0 %v127
    %146 = vmatprep.subr.mxu0 0.0
    %147 = vmatpush1.msra.mxu0 %v126
    %148 = vmatprep.subr.mxu0 0.0
    %149 = vmatpush1.msra.mxu0 %v125
    %150 = vmatprep.subr.mxu0 0.0
    %151 = vmatpush1.msra.mxu0 %v124
    %152 = vmatprep.subr.mxu0 0.0
    %153 = vmatpush1.msra.mxu0 %v123
    %154 = vmatprep.subr.mxu0 0.0
    %155 = vmatpush1.msra.mxu0 %v122
    %156 = vmatprep.subr.mxu0 0.0
    %157 = vmatpush1.msra.mxu0 %v121
    %158 = vmatprep.subr.mxu0 0.0
    %159 = vmatpush1.msra.mxu0 %v120
    %160 = vmatprep.subr.mxu0 0.0
    %161 = vmatpush1.msra.mxu0 %v119
    %162 = vmatprep.subr.mxu0 0.0
    %163 = vmatpush1.msra.mxu0 %v118
    %164 = vmatprep.subr.mxu0 0.0
    %165 = vmatpush1.msra.mxu0 %v117
    %166 = vmatprep.subr.mxu0 0.0
    %167 = vmatpush1.msra.mxu0 %v116
    %168 = vmatprep.subr.mxu0 0.0
    %169 = vmatpush1.msra.mxu0 %v115
    %170 = vmatprep.subr.mxu0 0.0
    %171 = vmatpush2.msra.mxu0 0.0
    %172 = vmatprep.subr.mxu0 0.0
    %173 = vmatpush2.msra.mxu0 0.0
    %174 = vmatprep.subr.mxu0 0.0
    %175 = vmatpush2.msra.mxu0 0.0
    %176 = vmatprep.subr.mxu0 0.0
    %177 = vmatpush2.msra.mxu0 0.0
    %178 = vmatprep.subr.mxu0 0.0
    %179 = vmatpush2.msra.mxu0 0.0
    %180 = vmatprep.subr.mxu0 0.0
    %181 = vmatpush2.msra.mxu0 0.0
    %182 = vmatprep.subr.mxu0 0.0
    %183 = vmatpush2.msra.mxu0 0.0
    %184 = vmatprep.subr.mxu0 0.0
    %185 = vmatpush2.msra.mxu0 0.0
    %186 = vmatprep.subr.mxu0 0.0
    %187 = vmatpush2.msra.mxu0 0.0
    %188 = vmatprep.subr.mxu0 0.0
    %189 = vmatpush2.msra.mxu0 0.0
    %190 = vmatprep.subr.mxu0 0.0
    %191 = vmatpush2.msra.mxu0 0.0
    %192 = vmatprep.subr.mxu0 0.0
    %193 = vmatpush2.msra.mxu0 0.0
    %194 = vmatprep.subr.mxu0 0.0
    %195 = vmatpush2.msra.mxu0 0.0
    %196 = vmatprep.subr.mxu0 0.0
    %197 = vmatpush2.msra.mxu0 0.0
    %198 = vmatprep.subr.mxu0 0.0
    %199 = vmatpush2.msra.mxu0 0.0
    %200 = vmatprep.subr.mxu0 0.0
    %201 = vmatpush2.msra.mxu0 0.0
    %202 = vmatprep.mubr.f32.mxu0 0.0
    %203 = vmatmul.mubr.f32.gmra.mxu0 %v99
    %v204 = vpop.f32.mrf.mxu0
    %v205 = vadd.f32 %v136, %v204
    %v206 = vpop.f32.mrf.mxu0
    %207 = vmatprep.mubr.f32.mxu0 0.0
    %208 = vmatmul.mubr.f32.gmra.mxu0 %v100
    %v209 = vpop.f32.mrf.mxu0
    %v210 = vadd.f32 %v136, %v209
    %v211 = vpop.f32.mrf.mxu0
    %212 = vmatprep.mubr.f32.mxu0 0.0
    %213 = vmatmul.mubr.f32.gmra.mxu0 %v101
    %v214 = vpop.f32.mrf.mxu0
    %v215 = vadd.f32 %v136, %v214
    %v216 = vpop.f32.mrf.mxu0
    %217 = vmatprep.mubr.f32.mxu0 0.0
    %218 = vmatmul.mubr.f32.gmra.mxu0 %v102
    %v219 = vpop.f32.mrf.mxu0
    %v220 = vadd.f32 %v136, %v219
    %v221 = vpop.f32.mrf.mxu0
    %222 = vmatprep.mubr.f32.mxu0 0.0
    %223 = vmatmul.mubr.f32.gmra.mxu0 %v103
    %v224 = vpop.f32.mrf.mxu0
    %v225 = vadd.f32 %v136, %v224
    %v226 = vpop.f32.mrf.mxu0
    %227 = vmatprep.mubr.f32.mxu0 0.0
    %228 = vmatmul.mubr.f32.gmra.mxu0 %v104
    %v229 = vpop.f32.mrf.mxu0
    %v230 = vadd.f32 %v136, %v229
    %v231 = vpop.f32.mrf.mxu0
    %232 = vmatprep.mubr.f32.mxu0 0.0
    %233 = vmatmul.mubr.f32.gmra.mxu0 %v105
    %v234 = vpop.f32.mrf.mxu0
    %v235 = vadd.f32 %v136, %v234
    %v236 = vpop.f32.mrf.mxu0
    %237 = vmatprep.mubr.f32.mxu0 0.0
    %238 = vmatmul.mubr.f32.gmra.mxu0 %v106
    %v239 = vpop.f32.mrf.mxu0
    %v240 = vadd.f32 %v136, %v239
    %v241 = vpop.f32.mrf.mxu0
    %242 = vmatprep.mubr.f32.mxu0 0.0
    %243 = vmatmul.mubr.f32.gmra.mxu0 %v107
    %v244 = vpop.f32.mrf.mxu0
    %v245 = vadd.f32 %v136, %v244
    %v246 = vpop.f32.mrf.mxu0
    %247 = vmatprep.mubr.f32.mxu0 0.0
    %248 = vmatmul.mubr.f32.gmra.mxu0 %v108
    %v249 = vpop.f32.mrf.mxu0
    %v250 = vadd.f32 %v136, %v249
    %v251 = vpop.f32.mrf.mxu0
    %252 = vmatprep.mubr.f32.mxu0 0.0
    %253 = vmatmul.mubr.f32.gmra.mxu0 %v109
    %v254 = vpop.f32.mrf.mxu0
    %v255 = vadd.f32 %v136, %v254
    %v256 = vpop.f32.mrf.mxu0
    %257 = vmatprep.mubr.f32.mxu0 0.0
    %258 = vmatmul.mubr.f32.gmra.mxu0 %v110
    %v259 = vpop.f32.mrf.mxu0
    %v260 = vadd.f32 %v136, %v259
    %v261 = vpop.f32.mrf.mxu0
    %262 = vmatprep.mubr.f32.mxu0 0.0
    %263 = vmatmul.mubr.f32.gmra.mxu0 %v111
    %v264 = vpop.f32.mrf.mxu0
    %v265 = vadd.f32 %v136, %v264
    %v266 = vpop.f32.mrf.mxu0
    %267 = vmatprep.mubr.f32.mxu0 0.0
    %268 = vmatmul.mubr.f32.gmra.mxu0 %v112
    %v269 = vpop.f32.mrf.mxu0
    %v270 = vadd.f32 %v136, %v269
    %v271 = vpop.f32.mrf.mxu0
    %272 = vmatprep.mubr.f32.mxu0 0.0
    %273 = vmatmul.mubr.f32.gmra.mxu0 %v113
    %v274 = vpop.f32.mrf.mxu0
    %v275 = vadd.f32 %v136, %v274
    %v276 = vpop.f32.mrf.mxu0
    %277 = vmatprep.mubr.f32.mxu0 0.0
    %278 = vmatmul.mubr.f32.gmra.mxu0 %v114
    %v279 = vpop.f32.mrf.mxu0
    %v280 = vadd.f32 %v136, %v279
    %v281 = vpop.f32.mrf.mxu0
    %282 = vdwg.mxu0
    %v283 = vld [vmem:[%s0] sm:$0xff]
    %v284 = vld [vmem:[%s0 + $0x8] sm:$0xff]
    %v285 = vld [vmem:[%s0 + $0x10] sm:$0xff]
    %v286 = vld [vmem:[%s0 + $0x18] sm:$0xff]
    %v287 = vld [vmem:[%s0 + $0x20] sm:$0xff]
    %v288 = vld [vmem:[%s0 + $0x28] sm:$0xff]
    %v289 = vld [vmem:[%s0 + $0x30] sm:$0xff]
    %v290 = vld [vmem:[%s0 + $0x38] sm:$0xff]
    %v291 = vld [vmem:[%s0 + $0x40] sm:$0xff]
    %v292 = vld [vmem:[%s0 + $0x48] sm:$0xff]
    %v293 = vld [vmem:[%s0 + $0x50] sm:$0xff]
    %v294 = vld [vmem:[%s0 + $0x58] sm:$0xff]
    %v295 = vld [vmem:[%s0 + $0x60] sm:$0xff]
    %v296 = vld [vmem:[%s0 + $0x68] sm:$0xff]
    %v297 = vld [vmem:[%s0 + $0x70] sm:$0xff]
    %v298 = vld [vmem:[%s0 + $0x78] sm:$0xff]
    %299 = vmatprep.subr.mxu0 0.0
    %300 = vmatpush1.msra.mxu0 %v280
    %301 = vmatprep.subr.mxu0 0.0
    %302 = vmatpush1.msra.mxu0 %v275
    %303 = vmatprep.subr.mxu0 0.0
    %304 = vmatpush1.msra.mxu0 %v270
    %305 = vmatprep.subr.mxu0 0.0
    %306 = vmatpush1.msra.mxu0 %v265
    %307 = vmatprep.subr.mxu0 0.0
    %308 = vmatpush1.msra.mxu0 %v260
    %309 = vmatprep.subr.mxu0 0.0
    %310 = vmatpush1.msra.mxu0 %v255
    %311 = vmatprep.subr.mxu0 0.0
    %312 = vmatpush1.msra.mxu0 %v250
    %313 = vmatprep.subr.mxu0 0.0
    %314 = vmatpush1.msra.mxu0 %v245
    %315 = vmatprep.subr.mxu0 0.0
    %316 = vmatpush1.msra.mxu0 %v240
    %317 = vmatprep.subr.mxu0 0.0
    %318 = vmatpush1.msra.mxu0 %v235
    %319 = vmatprep.subr.mxu0 0.0
    %320 = vmatpush1.msra.mxu0 %v230
    %321 = vmatprep.subr.mxu0 0.0
    %322 = vmatpush1.msra.mxu0 %v225
    %323 = vmatprep.subr.mxu0 0.0
    %324 = vmatpush1.msra.mxu0 %v220
    %325 = vmatprep.subr.mxu0 0.0
    %326 = vmatpush1.msra.mxu0 %v215
    %327 = vmatprep.subr.mxu0 0.0
    %328 = vmatpush1.msra.mxu0 %v210
    %329 = vmatprep.subr.mxu0 0.0
    %330 = vmatpush1.msra.mxu0 %v205
    %331 = vmatprep.subr.mxu0 0.0
    %332 = vmatpush2.msra.mxu0 0.0
    %333 = vmatprep.subr.mxu0 0.0
    %334 = vmatpush2.msra.mxu0 0.0
    %335 = vmatprep.subr.mxu0 0.0
    %336 = vmatpush2.msra.mxu0 0.0
    %337 = vmatprep.subr.mxu0 0.0
    %338 = vmatpush2.msra.mxu0 0.0
    %339 = vmatprep.subr.mxu0 0.0
    %340 = vmatpush2.msra.mxu0 0.0
    %341 = vmatprep.subr.mxu0 0.0
    %342 = vmatpush2.msra.mxu0 0.0
    %343 = vmatprep.subr.mxu0 0.0
    %344 = vmatpush2.msra.mxu0 0.0
    %345 = vmatprep.subr.mxu0 0.0
    %346 = vmatpush2.msra.mxu0 0.0
    %347 = vmatprep.subr.mxu0 0.0
    %348 = vmatpush2.msra.mxu0 0.0
    %349 = vmatprep.subr.mxu0 0.0
    %350 = vmatpush2.msra.mxu0 0.0
    %351 = vmatprep.subr.mxu0 0.0
    %352 = vmatpush2.msra.mxu0 0.0
    %353 = vmatprep.subr.mxu0 0.0
    %354 = vmatpush2.msra.mxu0 0.0
    %355 = vmatprep.subr.mxu0 0.0
    %356 = vmatpush2.msra.mxu0 0.0
    %357 = vmatprep.subr.mxu0 0.0
    %358 = vmatpush2.msra.mxu0 0.0
    %359 = vmatprep.subr.mxu0 0.0
    %360 = vmatpush2.msra.mxu0 0.0
    %361 = vmatprep.subr.mxu0 0.0
    %362 = vmatpush2.msra.mxu0 0.0
    %363 = vmatprep.mubr.f32.mxu0 0.0
    %364 = vmatmul.mubr.f32.gmra.mxu0 %v283
    %v365 = vpop.f32.mrf.mxu0
    %v366 = vadd.f32 0.0, %v365
    %v367 = vpop.f32.mrf.mxu0
    %368 = vmatprep.mubr.f32.mxu0 0.0
    %369 = vmatmul.mubr.f32.gmra.mxu0 %v284
    %v370 = vpop.f32.mrf.mxu0
    %v371 = vadd.f32 0.0, %v370
    %v372 = vpop.f32.mrf.mxu0
    %373 = vmatprep.mubr.f32.mxu0 0.0
    %374 = vmatmul.mubr.f32.gmra.mxu0 %v285
    %v375 = vpop.f32.mrf.mxu0
    %v376 = vadd.f32 0.0, %v375
    %v377 = vpop.f32.mrf.mxu0
    %378 = vmatprep.mubr.f32.mxu0 0.0
    %379 = vmatmul.mubr.f32.gmra.mxu0 %v286
    %v380 = vpop.f32.mrf.mxu0
    %v381 = vadd.f32 0.0, %v380
    %v382 = vpop.f32.mrf.mxu0
    %383 = vmatprep.mubr.f32.mxu0 0.0
    %384 = vmatmul.mubr.f32.gmra.mxu0 %v287
    %v385 = vpop.f32.mrf.mxu0
    %v386 = vadd.f32 0.0, %v385
    %v387 = vpop.f32.mrf.mxu0
    %388 = vmatprep.mubr.f32.mxu0 0.0
    %389 = vmatmul.mubr.f32.gmra.mxu0 %v288
    %v390 = vpop.f32.mrf.mxu0
    %v391 = vadd.f32 0.0, %v390
    %v392 = vpop.f32.mrf.mxu0
    %393 = vmatprep.mubr.f32.mxu0 0.0
    %394 = vmatmul.mubr.f32.gmra.mxu0 %v289
    %v395 = vpop.f32.mrf.mxu0
    %v396 = vadd.f32 0.0, %v395
    %v397 = vpop.f32.mrf.mxu0
    %398 = vmatprep.mubr.f32.mxu0 0.0
    %399 = vmatmul.mubr.f32.gmra.mxu0 %v290
    %v400 = vpop.f32.mrf.mxu0
    %v401 = vadd.f32 0.0, %v400
    %v402 = vpop.f32.mrf.mxu0
    %403 = vmatprep.mubr.f32.mxu0 0.0
    %404 = vmatmul.mubr.f32.gmra.mxu0 %v291
    %v405 = vpop.f32.mrf.mxu0
    %v406 = vadd.f32 0.0, %v405
    %v407 = vpop.f32.mrf.mxu0
    %408 = vmatprep.mubr.f32.mxu0 0.0
    %409 = vmatmul.mubr.f32.gmra.mxu0 %v292
    %v410 = vpop.f32.mrf.mxu0
    %v411 = vadd.f32 0.0, %v410
    %v412 = vpop.f32.mrf.mxu0
    %413 = vmatprep.mubr.f32.mxu0 0.0
    %414 = vmatmul.mubr.f32.gmra.mxu0 %v293
    %v415 = vpop.f32.mrf.mxu0
    %v416 = vadd.f32 0.0, %v415
    %v417 = vpop.f32.mrf.mxu0
    %418 = vmatprep.mubr.f32.mxu0 0.0
    %419 = vmatmul.mubr.f32.gmra.mxu0 %v294
    %v420 = vpop.f32.mrf.mxu0
    %v421 = vadd.f32 0.0, %v420
    %v422 = vpop.f32.mrf.mxu0
    %423 = vmatprep.mubr.f32.mxu0 0.0
    %424 = vmatmul.mubr.f32.gmra.mxu0 %v295
    %v425 = vpop.f32.mrf.mxu0
    %v426 = vadd.f32 0.0, %v425
    %v427 = vpop.f32.mrf.mxu0
    %428 = vmatprep.mubr.f32.mxu0 0.0
    %429 = vmatmul.mubr.f32.gmra.mxu0 %v296
    %v430 = vpop.f32.mrf.mxu0
    %v431 = vadd.f32 0.0, %v430
    %v432 = vpop.f32.mrf.mxu0
    %433 = vmatprep.mubr.f32.mxu0 0.0
    %434 = vmatmul.mubr.f32.gmra.mxu0 %v297
    %v435 = vpop.f32.mrf.mxu0
    %v436 = vadd.f32 0.0, %v435
    %v437 = vpop.f32.mrf.mxu0
    %438 = vmatprep.mubr.f32.mxu0 0.0
    %439 = vmatmul.mubr.f32.gmra.mxu0 %v298
    %v440 = vpop.f32.mrf.mxu0
    %v441 = vadd.f32 0.0, %v440
    %v442 = vpop.f32.mrf.mxu0
    %443 = vdwg.mxu0
    %v444 = vld [vmem:[%s5] sm:$0xff]
    %v445 = vld [vmem:[%s5 + $0x8] sm:$0xff]
    %v446 = vld [vmem:[%s5 + $0x10] sm:$0xff]
    %v447 = vld [vmem:[%s5 + $0x18] sm:$0xff]
    %v448 = vld [vmem:[%s5 + $0x20] sm:$0xff]
    %v449 = vld [vmem:[%s5 + $0x28] sm:$0xff]
    %v450 = vld [vmem:[%s5 + $0x30] sm:$0xff]
    %v451 = vld [vmem:[%s5 + $0x38] sm:$0xff]
    %v452 = vld [vmem:[%s5 + $0x40] sm:$0xff]
    %v453 = vld [vmem:[%s5 + $0x48] sm:$0xff]
    %v454 = vld [vmem:[%s5 + $0x50] sm:$0xff]
    %v455 = vld [vmem:[%s5 + $0x58] sm:$0xff]
    %v456 = vld [vmem:[%s5 + $0x60] sm:$0xff]
    %v457 = vld [vmem:[%s5 + $0x68] sm:$0xff]
    %v458 = vld [vmem:[%s5 + $0x70] sm:$0xff]
    %v459 = vld [vmem:[%s5 + $0x78] sm:$0xff]
    %v460 = vld [vmem:[%s6] sm:$0x1]
    %v462 = vlaneseq
    %v463 = vshrl.u32 %v462, 7
    %v464 = vsub.s32 0, %v463
    %v465 = vrot.slane %v460, %v464
    %467 = vmatprep.subr.mxu0 0.0
    %468 = vmatpush1.msra.mxu0 %v459
    %469 = vmatprep.subr.mxu0 0.0
    %470 = vmatpush1.msra.mxu0 %v458
    %471 = vmatprep.subr.mxu0 0.0
    %472 = vmatpush1.msra.mxu0 %v457
    %473 = vmatprep.subr.mxu0 0.0
    %474 = vmatpush1.msra.mxu0 %v456
    %475 = vmatprep.subr.mxu0 0.0
    %476 = vmatpush1.msra.mxu0 %v455
    %477 = vmatprep.subr.mxu0 0.0
    %478 = vmatpush1.msra.mxu0 %v454
    %479 = vmatprep.subr.mxu0 0.0
    %480 = vmatpush1.msra.mxu0 %v453
    %481 = vmatprep.subr.mxu0 0.0
    %482 = vmatpush1.msra.mxu0 %v452
    %483 = vmatprep.subr.mxu0 0.0
    %484 = vmatpush1.msra.mxu0 %v451
    %485 = vmatprep.subr.mxu0 0.0
    %486 = vmatpush1.msra.mxu0 %v450
    %487 = vmatprep.subr.mxu0 0.0
    %488 = vmatpush1.msra.mxu0 %v449
    %489 = vmatprep.subr.mxu0 0.0
    %490 = vmatpush1.msra.mxu0 %v448
    %491 = vmatprep.subr.mxu0 0.0
    %492 = vmatpush1.msra.mxu0 %v447
    %493 = vmatprep.subr.mxu0 0.0
    %494 = vmatpush1.msra.mxu0 %v446
    %495 = vmatprep.subr.mxu0 0.0
    %496 = vmatpush1.msra.mxu0 %v445
    %497 = vmatprep.subr.mxu0 0.0
    %498 = vmatpush1.msra.mxu0 %v444
    %499 = vmatprep.subr.mxu0 0.0
    %500 = vmatpush2.msra.mxu0 0.0
    %501 = vmatprep.subr.mxu0 0.0
    %502 = vmatpush2.msra.mxu0 0.0
    %503 = vmatprep.subr.mxu0 0.0
    %504 = vmatpush2.msra.mxu0 0.0
    %505 = vmatprep.subr.mxu0 0.0
    %506 = vmatpush2.msra.mxu0 0.0
    %507 = vmatprep.subr.mxu0 0.0
    %508 = vmatpush2.msra.mxu0 0.0
    %509 = vmatprep.subr.mxu0 0.0
    %510 = vmatpush2.msra.mxu0 0.0
    %511 = vmatprep.subr.mxu0 0.0
    %512 = vmatpush2.msra.mxu0 0.0
    %513 = vmatprep.subr.mxu0 0.0
    %514 = vmatpush2.msra.mxu0 0.0
    %515 = vmatprep.subr.mxu0 0.0
    %516 = vmatpush2.msra.mxu0 0.0
    %517 = vmatprep.subr.mxu0 0.0
    %518 = vmatpush2.msra.mxu0 0.0
    %519 = vmatprep.subr.mxu0 0.0
    %520 = vmatpush2.msra.mxu0 0.0
    %521 = vmatprep.subr.mxu0 0.0
    %522 = vmatpush2.msra.mxu0 0.0
    %523 = vmatprep.subr.mxu0 0.0
    %524 = vmatpush2.msra.mxu0 0.0
    %525 = vmatprep.subr.mxu0 0.0
    %526 = vmatpush2.msra.mxu0 0.0
    %527 = vmatprep.subr.mxu0 0.0
    %528 = vmatpush2.msra.mxu0 0.0
    %529 = vmatprep.subr.mxu0 0.0
    %530 = vmatpush2.msra.mxu0 0.0
    %531 = vmatprep.mubr.f32.mxu0 0.0
    %532 = vmatmul.mubr.f32.gmra.mxu0 %v366
    %v533 = vpop.f32.mrf.mxu0
    %v534 = vadd.f32 %v465, %v533
    %v535 = vpop.f32.mrf.mxu0
    %536 = vmatprep.mubr.f32.mxu0 0.0
    %537 = vmatmul.mubr.f32.gmra.mxu0 %v371
    %v538 = vpop.f32.mrf.mxu0
    %v539 = vadd.f32 %v465, %v538
    %v540 = vpop.f32.mrf.mxu0
    %541 = vmatprep.mubr.f32.mxu0 0.0
    %542 = vmatmul.mubr.f32.gmra.mxu0 %v376
    %v543 = vpop.f32.mrf.mxu0
    %v544 = vadd.f32 %v465, %v543
    %v545 = vpop.f32.mrf.mxu0
    %546 = vmatprep.mubr.f32.mxu0 0.0
    %547 = vmatmul.mubr.f32.gmra.mxu0 %v381
    %v548 = vpop.f32.mrf.mxu0
    %v549 = vadd.f32 %v465, %v548
    %v550 = vpop.f32.mrf.mxu0
    %551 = vmatprep.mubr.f32.mxu0 0.0
    %552 = vmatmul.mubr.f32.gmra.mxu0 %v386
    %v553 = vpop.f32.mrf.mxu0
    %v554 = vadd.f32 %v465, %v553
    %v555 = vpop.f32.mrf.mxu0
    %556 = vmatprep.mubr.f32.mxu0 0.0
    %557 = vmatmul.mubr.f32.gmra.mxu0 %v391
    %v558 = vpop.f32.mrf.mxu0
    %v559 = vadd.f32 %v465, %v558
    %v560 = vpop.f32.mrf.mxu0
    %561 = vmatprep.mubr.f32.mxu0 0.0
    %562 = vmatmul.mubr.f32.gmra.mxu0 %v396
    %v563 = vpop.f32.mrf.mxu0
    %v564 = vadd.f32 %v465, %v563
    %v565 = vpop.f32.mrf.mxu0
    %566 = vmatprep.mubr.f32.mxu0 0.0
    %567 = vmatmul.mubr.f32.gmra.mxu0 %v401
    %v568 = vpop.f32.mrf.mxu0
    %v569 = vadd.f32 %v465, %v568
    %v570 = vpop.f32.mrf.mxu0
    %571 = vmatprep.mubr.f32.mxu0 0.0
    %572 = vmatmul.mubr.f32.gmra.mxu0 %v406
    %v573 = vpop.f32.mrf.mxu0
    %v574 = vadd.f32 %v465, %v573
    %v575 = vpop.f32.mrf.mxu0
    %576 = vmatprep.mubr.f32.mxu0 0.0
    %577 = vmatmul.mubr.f32.gmra.mxu0 %v411
    %v578 = vpop.f32.mrf.mxu0
    %v579 = vadd.f32 %v465, %v578
    %v580 = vpop.f32.mrf.mxu0
    %581 = vmatprep.mubr.f32.mxu0 0.0
    %582 = vmatmul.mubr.f32.gmra.mxu0 %v416
    %v583 = vpop.f32.mrf.mxu0
    %v584 = vadd.f32 %v465, %v583
    %v585 = vpop.f32.mrf.mxu0
    %586 = vmatprep.mubr.f32.mxu0 0.0
    %587 = vmatmul.mubr.f32.gmra.mxu0 %v421
    %v588 = vpop.f32.mrf.mxu0
    %v589 = vadd.f32 %v465, %v588
    %v590 = vpop.f32.mrf.mxu0
    %591 = vmatprep.mubr.f32.mxu0 0.0
    %592 = vmatmul.mubr.f32.gmra.mxu0 %v426
    %v593 = vpop.f32.mrf.mxu0
    %v594 = vadd.f32 %v465, %v593
    %v595 = vpop.f32.mrf.mxu0
    %596 = vmatprep.mubr.f32.mxu0 0.0
    %597 = vmatmul.mubr.f32.gmra.mxu0 %v431
    %v598 = vpop.f32.mrf.mxu0
    %v599 = vadd.f32 %v465, %v598
    %v600 = vpop.f32.mrf.mxu0
    %601 = vmatprep.mubr.f32.mxu0 0.0
    %602 = vmatmul.mubr.f32.gmra.mxu0 %v436
    %v603 = vpop.f32.mrf.mxu0
    %v604 = vadd.f32 %v465, %v603
    %v605 = vpop.f32.mrf.mxu0
    %606 = vmatprep.mubr.f32.mxu0 0.0
    %607 = vmatmul.mubr.f32.gmra.mxu0 %v441
    %v608 = vpop.f32.mrf.mxu0
    %v609 = vadd.f32 %v465, %v608
    %v610 = vpop.f32.mrf.mxu0
    %611 = vdwg.mxu0
    %v612 = vmax.f32 %v534, 0.0
    %v613 = vmax.f32 %v539, 0.0
    %v614 = vmax.f32 %v544, 0.0
    %v615 = vmax.f32 %v549, 0.0
    %v616 = vmax.f32 %v554, 0.0
    %v617 = vmax.f32 %v559, 0.0
    %v618 = vmax.f32 %v564, 0.0
    %v619 = vmax.f32 %v569, 0.0
    %v620 = vmax.f32 %v574, 0.0
    %v621 = vmax.f32 %v579, 0.0
    %v622 = vmax.f32 %v584, 0.0
    %v623 = vmax.f32 %v589, 0.0
    %v624 = vmax.f32 %v594, 0.0
    %v625 = vmax.f32 %v599, 0.0
    %v626 = vmax.f32 %v604, 0.0
    %v627 = vmax.f32 %v609, 0.0
    %v628 = vld [vmem:[#allocation4] sm:$0xff]
    %v629 = vld [vmem:[#allocation4 + $0x8] sm:$0xff]
    %v630 = vld [vmem:[#allocation4 + $0x10] sm:$0xff]
    %v631 = vld [vmem:[#allocation4 + $0x18] sm:$0xff]
    %v632 = vld [vmem:[#allocation4 + $0x20] sm:$0xff]
    %v633 = vld [vmem:[#allocation4 + $0x28] sm:$0xff]
    %v634 = vld [vmem:[#allocation4 + $0x30] sm:$0xff]
    %v635 = vld [vmem:[#allocation4 + $0x38] sm:$0xff]
    %v636 = vld [vmem:[#allocation4 + $0x40] sm:$0xff]
    %v637 = vld [vmem:[#allocation4 + $0x48] sm:$0xff]
    %v638 = vld [vmem:[#allocation4 + $0x50] sm:$0xff]
    %v639 = vld [vmem:[#allocation4 + $0x58] sm:$0xff]
    %v640 = vld [vmem:[#allocation4 + $0x60] sm:$0xff]
    %v641 = vld [vmem:[#allocation4 + $0x68] sm:$0xff]
    %v642 = vld [vmem:[#allocation4 + $0x70] sm:$0xff]
    %v643 = vld [vmem:[#allocation4 + $0x78] sm:$0xff]
    %v644 = vld [vmem:[%s8] sm:$0x1]
    %v646 = vlaneseq
    %v647 = vshrl.u32 %v646, 7
    %v648 = vsub.s32 0, %v647
    %v649 = vrot.slane %v644, %v648
    %651 = vmatprep.subr.mxu0 0.0
    %652 = vmatpush1.msra.mxu0 %v643
    %653 = vmatprep.subr.mxu0 0.0
    %654 = vmatpush1.msra.mxu0 %v642
    %655 = vmatprep.subr.mxu0 0.0
    %656 = vmatpush1.msra.mxu0 %v641
    %657 = vmatprep.subr.mxu0 0.0
    %658 = vmatpush1.msra.mxu0 %v640
    %659 = vmatprep.subr.mxu0 0.0
    %660 = vmatpush1.msra.mxu0 %v639
    %661 = vmatprep.subr.mxu0 0.0
    %662 = vmatpush1.msra.mxu0 %v638
    %663 = vmatprep.subr.mxu0 0.0
    %664 = vmatpush1.msra.mxu0 %v637
    %665 = vmatprep.subr.mxu0 0.0
    %666 = vmatpush1.msra.mxu0 %v636
    %667 = vmatprep.subr.mxu0 0.0
    %668 = vmatpush1.msra.mxu0 %v635
    %669 = vmatprep.subr.mxu0 0.0
    %670 = vmatpush1.msra.mxu0 %v634
    %671 = vmatprep.subr.mxu0 0.0
    %672 = vmatpush1.msra.mxu0 %v633
    %673 = vmatprep.subr.mxu0 0.0
    %674 = vmatpush1.msra.mxu0 %v632
    %675 = vmatprep.subr.mxu0 0.0
    %676 = vmatpush1.msra.mxu0 %v631
    %677 = vmatprep.subr.mxu0 0.0
    %678 = vmatpush1.msra.mxu0 %v630
    %679 = vmatprep.subr.mxu0 0.0
    %680 = vmatpush1.msra.mxu0 %v629
    %681 = vmatprep.subr.mxu0 0.0
    %682 = vmatpush1.msra.mxu0 %v628
    %683 = vmatprep.subr.mxu0 0.0
    %684 = vmatpush2.msra.mxu0 0.0
    %685 = vmatprep.subr.mxu0 0.0
    %686 = vmatpush2.msra.mxu0 0.0
    %687 = vmatprep.subr.mxu0 0.0
    %688 = vmatpush2.msra.mxu0 0.0
    %689 = vmatprep.subr.mxu0 0.0
    %690 = vmatpush2.msra.mxu0 0.0
    %691 = vmatprep.subr.mxu0 0.0
    %692 = vmatpush2.msra.mxu0 0.0
    %693 = vmatprep.subr.mxu0 0.0
    %694 = vmatpush2.msra.mxu0 0.0
    %695 = vmatprep.subr.mxu0 0.0
    %696 = vmatpush2.msra.mxu0 0.0
    %697 = vmatprep.subr.mxu0 0.0
    %698 = vmatpush2.msra.mxu0 0.0
    %699 = vmatprep.subr.mxu0 0.0
    %700 = vmatpush2.msra.mxu0 0.0
    %701 = vmatprep.subr.mxu0 0.0
    %702 = vmatpush2.msra.mxu0 0.0
    %703 = vmatprep.subr.mxu0 0.0
    %704 = vmatpush2.msra.mxu0 0.0
    %705 = vmatprep.subr.mxu0 0.0
    %706 = vmatpush2.msra.mxu0 0.0
    %707 = vmatprep.subr.mxu0 0.0
    %708 = vmatpush2.msra.mxu0 0.0
    %709 = vmatprep.subr.mxu0 0.0
    %710 = vmatpush2.msra.mxu0 0.0
    %711 = vmatprep.subr.mxu0 0.0
    %712 = vmatpush2.msra.mxu0 0.0
    %713 = vmatprep.subr.mxu0 0.0
    %714 = vmatpush2.msra.mxu0 0.0
    %715 = vmatprep.mubr.f32.mxu0 0.0
    %716 = vmatmul.mubr.f32.gmra.mxu0 %v612
    %v717 = vpop.f32.mrf.mxu0
    %v718 = vadd.f32 %v649, %v717
    %v719 = vpop.f32.mrf.mxu0
    %720 = vmatprep.mubr.f32.mxu0 0.0
    %721 = vmatmul.mubr.f32.gmra.mxu0 %v613
    %v722 = vpop.f32.mrf.mxu0
    %v723 = vadd.f32 %v649, %v722
    %v724 = vpop.f32.mrf.mxu0
    %725 = vmatprep.mubr.f32.mxu0 0.0
    %726 = vmatmul.mubr.f32.gmra.mxu0 %v614
    %v727 = vpop.f32.mrf.mxu0
    %v728 = vadd.f32 %v649, %v727
    %v729 = vpop.f32.mrf.mxu0
    %730 = vmatprep.mubr.f32.mxu0 0.0
    %731 = vmatmul.mubr.f32.gmra.mxu0 %v615
    %v732 = vpop.f32.mrf.mxu0
    %v733 = vadd.f32 %v649, %v732
    %v734 = vpop.f32.mrf.mxu0
    %735 = vmatprep.mubr.f32.mxu0 0.0
    %736 = vmatmul.mubr.f32.gmra.mxu0 %v616
    %v737 = vpop.f32.mrf.mxu0
    %v738 = vadd.f32 %v649, %v737
    %v739 = vpop.f32.mrf.mxu0
    %740 = vmatprep.mubr.f32.mxu0 0.0
    %741 = vmatmul.mubr.f32.gmra.mxu0 %v617
    %v742 = vpop.f32.mrf.mxu0
    %v743 = vadd.f32 %v649, %v742
    %v744 = vpop.f32.mrf.mxu0
    %745 = vmatprep.mubr.f32.mxu0 0.0
    %746 = vmatmul.mubr.f32.gmra.mxu0 %v618
    %v747 = vpop.f32.mrf.mxu0
    %v748 = vadd.f32 %v649, %v747
    %v749 = vpop.f32.mrf.mxu0
    %750 = vmatprep.mubr.f32.mxu0 0.0
    %751 = vmatmul.mubr.f32.gmra.mxu0 %v619
    %v752 = vpop.f32.mrf.mxu0
    %v753 = vadd.f32 %v649, %v752
    %v754 = vpop.f32.mrf.mxu0
    %755 = vmatprep.mubr.f32.mxu0 0.0
    %756 = vmatmul.mubr.f32.gmra.mxu0 %v620
    %v757 = vpop.f32.mrf.mxu0
    %v758 = vadd.f32 %v649, %v757
    %v759 = vpop.f32.mrf.mxu0
    %760 = vmatprep.mubr.f32.mxu0 0.0
    %761 = vmatmul.mubr.f32.gmra.mxu0 %v621
    %v762 = vpop.f32.mrf.mxu0
    %v763 = vadd.f32 %v649, %v762
    %v764 = vpop.f32.mrf.mxu0
    %765 = vmatprep.mubr.f32.mxu0 0.0
    %766 = vmatmul.mubr.f32.gmra.mxu0 %v622
    %v767 = vpop.f32.mrf.mxu0
    %v768 = vadd.f32 %v649, %v767
    %v769 = vpop.f32.mrf.mxu0
    %770 = vmatprep.mubr.f32.mxu0 0.0
    %771 = vmatmul.mubr.f32.gmra.mxu0 %v623
    %v772 = vpop.f32.mrf.mxu0
    %v773 = vadd.f32 %v649, %v772
    %v774 = vpop.f32.mrf.mxu0
    %775 = vmatprep.mubr.f32.mxu0 0.0
    %776 = vmatmul.mubr.f32.gmra.mxu0 %v624
    %v777 = vpop.f32.mrf.mxu0
    %v778 = vadd.f32 %v649, %v777
    %v779 = vpop.f32.mrf.mxu0
    %780 = vmatprep.mubr.f32.mxu0 0.0
    %781 = vmatmul.mubr.f32.gmra.mxu0 %v625
    %v782 = vpop.f32.mrf.mxu0
    %v783 = vadd.f32 %v649, %v782
    %v784 = vpop.f32.mrf.mxu0
    %785 = vmatprep.mubr.f32.mxu0 0.0
    %786 = vmatmul.mubr.f32.gmra.mxu0 %v626
    %v787 = vpop.f32.mrf.mxu0
    %v788 = vadd.f32 %v649, %v787
    %v789 = vpop.f32.mrf.mxu0
    %790 = vmatprep.mubr.f32.mxu0 0.0
    %791 = vmatmul.mubr.f32.gmra.mxu0 %v627
    %v792 = vpop.f32.mrf.mxu0
    %v793 = vadd.f32 %v649, %v792
    %v794 = vpop.f32.mrf.mxu0
    %795 = vdwg.mxu0
    %v796 = vmax.f32 %v718, 0.0
    %v797 = vmax.f32 %v723, 0.0
    %v798 = vmax.f32 %v728, 0.0
    %v799 = vmax.f32 %v733, 0.0
    %v800 = vmax.f32 %v738, 0.0
    %v801 = vmax.f32 %v743, 0.0
    %v802 = vmax.f32 %v748, 0.0
    %v803 = vmax.f32 %v753, 0.0
    %v804 = vmax.f32 %v758, 0.0
    %v805 = vmax.f32 %v763, 0.0
    %v806 = vmax.f32 %v768, 0.0
    %v807 = vmax.f32 %v773, 0.0
    %v808 = vmax.f32 %v778, 0.0
    %v809 = vmax.f32 %v783, 0.0
    %v810 = vmax.f32 %v788, 0.0
    %v811 = vmax.f32 %v793, 0.0
    %812 = vmatprep.subr.mxu0 0.0
    %813 = vmatpush1.msra.mxu0 %v811
    %814 = vmatprep.subr.mxu0 0.0
    %815 = vmatpush1.msra.mxu0 %v810
    %816 = vmatprep.subr.mxu0 0.0
    %817 = vmatpush1.msra.mxu0 %v809
    %818 = vmatprep.subr.mxu0 0.0
    %819 = vmatpush1.msra.mxu0 %v808
    %820 = vmatprep.subr.mxu0 0.0
    %821 = vmatpush1.msra.mxu0 %v807
    %822 = vmatprep.subr.mxu0 0.0
    %823 = vmatpush1.msra.mxu0 %v806
    %824 = vmatprep.subr.mxu0 0.0
    %825 = vmatpush1.msra.mxu0 %v805
    %826 = vmatprep.subr.mxu0 0.0
    %827 = vmatpush1.msra.mxu0 %v804
    %828 = vmatprep.subr.mxu0 0.0
    %829 = vmatpush1.msra.mxu0 %v803
    %830 = vmatprep.subr.mxu0 0.0
    %831 = vmatpush1.msra.mxu0 %v802
    %832 = vmatprep.subr.mxu0 0.0
    %833 = vmatpush1.msra.mxu0 %v801
    %834 = vmatprep.subr.mxu0 0.0
    %835 = vmatpush1.msra.mxu0 %v800
    %836 = vmatprep.subr.mxu0 0.0
    %837 = vmatpush1.msra.mxu0 %v799
    %838 = vmatprep.subr.mxu0 0.0
    %839 = vmatpush1.msra.mxu0 %v798
    %840 = vmatprep.subr.mxu0 0.0
    %841 = vmatpush1.msra.mxu0 %v797
    %842 = vmatprep.subr.mxu0 0.0
    %843 = vmatpush1.msra.mxu0 %v796
    %844 = vmatprep.subr.mxu0 0.0
    %845 = vmatpush2.msra.mxu0 0.0
    %846 = vmatprep.subr.mxu0 0.0
    %847 = vmatpush2.msra.mxu0 0.0
    %848 = vmatprep.subr.mxu0 0.0
    %849 = vmatpush2.msra.mxu0 0.0
    %850 = vmatprep.subr.mxu0 0.0
    %851 = vmatpush2.msra.mxu0 0.0
    %852 = vmatprep.subr.mxu0 0.0
    %853 = vmatpush2.msra.mxu0 0.0
    %854 = vmatprep.subr.mxu0 0.0
    %855 = vmatpush2.msra.mxu0 0.0
    %856 = vmatprep.subr.mxu0 0.0
    %857 = vmatpush2.msra.mxu0 0.0
    %858 = vmatprep.subr.mxu0 0.0
    %859 = vmatpush2.msra.mxu0 0.0
    %860 = vmatprep.subr.mxu0 0.0
    %861 = vmatpush2.msra.mxu0 0.0
    %862 = vmatprep.subr.mxu0 0.0
    %863 = vmatpush2.msra.mxu0 0.0
    %864 = vmatprep.subr.mxu0 0.0
    %865 = vmatpush2.msra.mxu0 0.0
    %866 = vmatprep.subr.mxu0 0.0
    %867 = vmatpush2.msra.mxu0 0.0
    %868 = vmatprep.subr.mxu0 0.0
    %869 = vmatpush2.msra.mxu0 0.0
    %870 = vmatprep.subr.mxu0 0.0
    %871 = vmatpush2.msra.mxu0 0.0
    %872 = vmatprep.subr.mxu0 0.0
    %873 = vmatpush2.msra.mxu0 0.0
    %874 = vmatprep.subr.mxu0 0.0
    %875 = vmatpush2.msra.mxu0 0.0
    %876 = vmatprep.mubr.f32.mxu0 0.0
    %877 = vmatmul.mubr.f32.gmra.mxu0 %v283
    %v878 = vpop.f32.mrf.mxu0
    %v879 = vadd.f32 0.0, %v878
    %v880 = vpop.f32.mrf.mxu0
    %881 = vmatprep.mubr.f32.mxu0 0.0
    %882 = vmatmul.mubr.f32.gmra.mxu0 %v284
    %v883 = vpop.f32.mrf.mxu0
    %v884 = vadd.f32 0.0, %v883
    %v885 = vpop.f32.mrf.mxu0
    %886 = vmatprep.mubr.f32.mxu0 0.0
    %887 = vmatmul.mubr.f32.gmra.mxu0 %v285
    %v888 = vpop.f32.mrf.mxu0
    %v889 = vadd.f32 0.0, %v888
    %v890 = vpop.f32.mrf.mxu0
    %891 = vmatprep.mubr.f32.mxu0 0.0
    %892 = vmatmul.mubr.f32.gmra.mxu0 %v286
    %v893 = vpop.f32.mrf.mxu0
    %v894 = vadd.f32 0.0, %v893
    %v895 = vpop.f32.mrf.mxu0
    %896 = vmatprep.mubr.f32.mxu0 0.0
    %897 = vmatmul.mubr.f32.gmra.mxu0 %v287
    %v898 = vpop.f32.mrf.mxu0
    %v899 = vadd.f32 0.0, %v898
    %v900 = vpop.f32.mrf.mxu0
    %901 = vmatprep.mubr.f32.mxu0 0.0
    %902 = vmatmul.mubr.f32.gmra.mxu0 %v288
    %v903 = vpop.f32.mrf.mxu0
    %v904 = vadd.f32 0.0, %v903
    %v905 = vpop.f32.mrf.mxu0
    %906 = vmatprep.mubr.f32.mxu0 0.0
    %907 = vmatmul.mubr.f32.gmra.mxu0 %v289
    %v908 = vpop.f32.mrf.mxu0
    %v909 = vadd.f32 0.0, %v908
    %v910 = vpop.f32.mrf.mxu0
    %911 = vmatprep.mubr.f32.mxu0 0.0
    %912 = vmatmul.mubr.f32.gmra.mxu0 %v290
    %v913 = vpop.f32.mrf.mxu0
    %v914 = vadd.f32 0.0, %v913
    %v915 = vpop.f32.mrf.mxu0
    %916 = vmatprep.mubr.f32.mxu0 0.0
    %917 = vmatmul.mubr.f32.gmra.mxu0 %v291
    %v918 = vpop.f32.mrf.mxu0
    %v919 = vadd.f32 0.0, %v918
    %v920 = vpop.f32.mrf.mxu0
    %921 = vmatprep.mubr.f32.mxu0 0.0
    %922 = vmatmul.mubr.f32.gmra.mxu0 %v292
    %v923 = vpop.f32.mrf.mxu0
    %v924 = vadd.f32 0.0, %v923
    %v925 = vpop.f32.mrf.mxu0
    %926 = vmatprep.mubr.f32.mxu0 0.0
    %927 = vmatmul.mubr.f32.gmra.mxu0 %v293
    %v928 = vpop.f32.mrf.mxu0
    %v929 = vadd.f32 0.0, %v928
    %v930 = vpop.f32.mrf.mxu0
    %931 = vmatprep.mubr.f32.mxu0 0.0
    %932 = vmatmul.mubr.f32.gmra.mxu0 %v294
    %v933 = vpop.f32.mrf.mxu0
    %v934 = vadd.f32 0.0, %v933
    %v935 = vpop.f32.mrf.mxu0
    %936 = vmatprep.mubr.f32.mxu0 0.0
    %937 = vmatmul.mubr.f32.gmra.mxu0 %v295
    %v938 = vpop.f32.mrf.mxu0
    %v939 = vadd.f32 0.0, %v938
    %v940 = vpop.f32.mrf.mxu0
    %941 = vmatprep.mubr.f32.mxu0 0.0
    %942 = vmatmul.mubr.f32.gmra.mxu0 %v296
    %v943 = vpop.f32.mrf.mxu0
    %v944 = vadd.f32 0.0, %v943
    %v945 = vpop.f32.mrf.mxu0
    %946 = vmatprep.mubr.f32.mxu0 0.0
    %947 = vmatmul.mubr.f32.gmra.mxu0 %v297
    %v948 = vpop.f32.mrf.mxu0
    %v949 = vadd.f32 0.0, %v948
    %v950 = vpop.f32.mrf.mxu0
    %951 = vmatprep.mubr.f32.mxu0 0.0
    %952 = vmatmul.mubr.f32.gmra.mxu0 %v298
    %v953 = vpop.f32.mrf.mxu0
    %v954 = vadd.f32 0.0, %v953
    %v955 = vpop.f32.mrf.mxu0
    %956 = vdwg.mxu0
    %s957 = scalar_lea.vmem %s5, 128
    %v958 = vld [vmem:[%s957] sm:$0xff]
    %v959 = vld [vmem:[%s957 + $0x8] sm:$0xff]
    %v960 = vld [vmem:[%s957 + $0x10] sm:$0xff]
    %v961 = vld [vmem:[%s957 + $0x18] sm:$0xff]
    %v962 = vld [vmem:[%s957 + $0x20] sm:$0xff]
    %v963 = vld [vmem:[%s957 + $0x28] sm:$0xff]
    %v964 = vld [vmem:[%s957 + $0x30] sm:$0xff]
    %v965 = vld [vmem:[%s957 + $0x38] sm:$0xff]
    %v966 = vld [vmem:[%s957 + $0x40] sm:$0xff]
    %v967 = vld [vmem:[%s957 + $0x48] sm:$0xff]
    %v968 = vld [vmem:[%s957 + $0x50] sm:$0xff]
    %v969 = vld [vmem:[%s957 + $0x58] sm:$0xff]
    %v970 = vld [vmem:[%s957 + $0x60] sm:$0xff]
    %v971 = vld [vmem:[%s957 + $0x68] sm:$0xff]
    %v972 = vld [vmem:[%s957 + $0x70] sm:$0xff]
    %v973 = vld [vmem:[%s957 + $0x78] sm:$0xff]
    %s974 = scalar_lea.vmem %s6, 1
    %v975 = vld [vmem:[%s974] sm:$0x1]
    %v977 = vlaneseq
    %v978 = vshrl.u32 %v977, 7
    %v979 = vsub.s32 0, %v978
    %v980 = vrot.slane %v975, %v979
    %982 = vmatprep.subr.mxu0 0.0
    %983 = vmatpush1.msra.mxu0 %v973
    %984 = vmatprep.subr.mxu0 0.0
    %985 = vmatpush1.msra.mxu0 %v972
    %986 = vmatprep.subr.mxu0 0.0
    %987 = vmatpush1.msra.mxu0 %v971
    %988 = vmatprep.subr.mxu0 0.0
    %989 = vmatpush1.msra.mxu0 %v970
    %990 = vmatprep.subr.mxu0 0.0
    %991 = vmatpush1.msra.mxu0 %v969
    %992 = vmatprep.subr.mxu0 0.0
    %993 = vmatpush1.msra.mxu0 %v968
    %994 = vmatprep.subr.mxu0 0.0
    %995 = vmatpush1.msra.mxu0 %v967
    %996 = vmatprep.subr.mxu0 0.0
    %997 = vmatpush1.msra.mxu0 %v966
    %998 = vmatprep.subr.mxu0 0.0
    %999 = vmatpush1.msra.mxu0 %v965
    %1000 = vmatprep.subr.mxu0 0.0
    %1001 = vmatpush1.msra.mxu0 %v964
    %1002 = vmatprep.subr.mxu0 0.0
    %1003 = vmatpush1.msra.mxu0 %v963
    %1004 = vmatprep.subr.mxu0 0.0
    %1005 = vmatpush1.msra.mxu0 %v962
    %1006 = vmatprep.subr.mxu0 0.0
    %1007 = vmatpush1.msra.mxu0 %v961
    %1008 = vmatprep.subr.mxu0 0.0
    %1009 = vmatpush1.msra.mxu0 %v960
    %1010 = vmatprep.subr.mxu0 0.0
    %1011 = vmatpush1.msra.mxu0 %v959
    %1012 = vmatprep.subr.mxu0 0.0
    %1013 = vmatpush1.msra.mxu0 %v958
    %1014 = vmatprep.subr.mxu0 0.0
    %1015 = vmatpush2.msra.mxu0 0.0
    %1016 = vmatprep.subr.mxu0 0.0
    %1017 = vmatpush2.msra.mxu0 0.0
    %1018 = vmatprep.subr.mxu0 0.0
    %1019 = vmatpush2.msra.mxu0 0.0
    %1020 = vmatprep.subr.mxu0 0.0
    %1021 = vmatpush2.msra.mxu0 0.0
    %1022 = vmatprep.subr.mxu0 0.0
    %1023 = vmatpush2.msra.mxu0 0.0
    %1024 = vmatprep.subr.mxu0 0.0
    %1025 = vmatpush2.msra.mxu0 0.0
    %1026 = vmatprep.subr.mxu0 0.0
    %1027 = vmatpush2.msra.mxu0 0.0
    %1028 = vmatprep.subr.mxu0 0.0
    %1029 = vmatpush2.msra.mxu0 0.0
    %1030 = vmatprep.subr.mxu0 0.0
    %1031 = vmatpush2.msra.mxu0 0.0
    %1032 = vmatprep.subr.mxu0 0.0
    %1033 = vmatpush2.msra.mxu0 0.0
    %1034 = vmatprep.subr.mxu0 0.0
    %1035 = vmatpush2.msra.mxu0 0.0
    %1036 = vmatprep.subr.mxu0 0.0
    %1037 = vmatpush2.msra.mxu0 0.0
    %1038 = vmatprep.subr.mxu0 0.0
    %1039 = vmatpush2.msra.mxu0 0.0
    %1040 = vmatprep.subr.mxu0 0.0
    %1041 = vmatpush2.msra.mxu0 0.0
    %1042 = vmatprep.subr.mxu0 0.0
    %1043 = vmatpush2.msra.mxu0 0.0
    %1044 = vmatprep.subr.mxu0 0.0
    %1045 = vmatpush2.msra.mxu0 0.0
    %1046 = vmatprep.mubr.f32.mxu0 0.0
    %1047 = vmatmul.mubr.f32.gmra.mxu0 %v879
    %v1048 = vpop.f32.mrf.mxu0
    %v1049 = vadd.f32 %v980, %v1048
    %v1050 = vpop.f32.mrf.mxu0
    %1051 = vmatprep.mubr.f32.mxu0 0.0
    %1052 = vmatmul.mubr.f32.gmra.mxu0 %v884
    %v1053 = vpop.f32.mrf.mxu0
    %v1054 = vadd.f32 %v980, %v1053
    %v1055 = vpop.f32.mrf.mxu0
    %1056 = vmatprep.mubr.f32.mxu0 0.0
    %1057 = vmatmul.mubr.f32.gmra.mxu0 %v889
    %v1058 = vpop.f32.mrf.mxu0
    %v1059 = vadd.f32 %v980, %v1058
    %v1060 = vpop.f32.mrf.mxu0
    %1061 = vmatprep.mubr.f32.mxu0 0.0
    %1062 = vmatmul.mubr.f32.gmra.mxu0 %v894
    %v1063 = vpop.f32.mrf.mxu0
    %v1064 = vadd.f32 %v980, %v1063
    %v1065 = vpop.f32.mrf.mxu0
    %1066 = vmatprep.mubr.f32.mxu0 0.0
    %1067 = vmatmul.mubr.f32.gmra.mxu0 %v899
    %v1068 = vpop.f32.mrf.mxu0
    %v1069 = vadd.f32 %v980, %v1068
    %v1070 = vpop.f32.mrf.mxu0
    %1071 = vmatprep.mubr.f32.mxu0 0.0
    %1072 = vmatmul.mubr.f32.gmra.mxu0 %v904
    %v1073 = vpop.f32.mrf.mxu0
    %v1074 = vadd.f32 %v980, %v1073
    %v1075 = vpop.f32.mrf.mxu0
    %1076 = vmatprep.mubr.f32.mxu0 0.0
    %1077 = vmatmul.mubr.f32.gmra.mxu0 %v909
    %v1078 = vpop.f32.mrf.mxu0
    %v1079 = vadd.f32 %v980, %v1078
    %v1080 = vpop.f32.mrf.mxu0
    %1081 = vmatprep.mubr.f32.mxu0 0.0
    %1082 = vmatmul.mubr.f32.gmra.mxu0 %v914
    %v1083 = vpop.f32.mrf.mxu0
    %v1084 = vadd.f32 %v980, %v1083
    %v1085 = vpop.f32.mrf.mxu0
    %1086 = vmatprep.mubr.f32.mxu0 0.0
    %1087 = vmatmul.mubr.f32.gmra.mxu0 %v919
    %v1088 = vpop.f32.mrf.mxu0
    %v1089 = vadd.f32 %v980, %v1088
    %v1090 = vpop.f32.mrf.mxu0
    %1091 = vmatprep.mubr.f32.mxu0 0.0
    %1092 = vmatmul.mubr.f32.gmra.mxu0 %v924
    %v1093 = vpop.f32.mrf.mxu0
    %v1094 = vadd.f32 %v980, %v1093
    %v1095 = vpop.f32.mrf.mxu0
    %1096 = vmatprep.mubr.f32.mxu0 0.0
    %1097 = vmatmul.mubr.f32.gmra.mxu0 %v929
    %v1098 = vpop.f32.mrf.mxu0
    %v1099 = vadd.f32 %v980, %v1098
    %v1100 = vpop.f32.mrf.mxu0
    %1101 = vmatprep.mubr.f32.mxu0 0.0
    %1102 = vmatmul.mubr.f32.gmra.mxu0 %v934
    %v1103 = vpop.f32.mrf.mxu0
    %v1104 = vadd.f32 %v980, %v1103
    %v1105 = vpop.f32.mrf.mxu0
    %1106 = vmatprep.mubr.f32.mxu0 0.0
    %1107 = vmatmul.mubr.f32.gmra.mxu0 %v939
    %v1108 = vpop.f32.mrf.mxu0
    %v1109 = vadd.f32 %v980, %v1108
    %v1110 = vpop.f32.mrf.mxu0
    %1111 = vmatprep.mubr.f32.mxu0 0.0
    %1112 = vmatmul.mubr.f32.gmra.mxu0 %v944
    %v1113 = vpop.f32.mrf.mxu0
    %v1114 = vadd.f32 %v980, %v1113
    %v1115 = vpop.f32.mrf.mxu0
    %1116 = vmatprep.mubr.f32.mxu0 0.0
    %1117 = vmatmul.mubr.f32.gmra.mxu0 %v949
    %v1118 = vpop.f32.mrf.mxu0
    %v1119 = vadd.f32 %v980, %v1118
    %v1120 = vpop.f32.mrf.mxu0
    %1121 = vmatprep.mubr.f32.mxu0 0.0
    %1122 = vmatmul.mubr.f32.gmra.mxu0 %v954
    %v1123 = vpop.f32.mrf.mxu0
    %v1124 = vadd.f32 %v980, %v1123
    %v1125 = vpop.f32.mrf.mxu0
    %1126 = vdwg.mxu0
    %v1127 = vmax.f32 %v1049, 0.0
    %v1128 = vmax.f32 %v1054, 0.0
    %v1129 = vmax.f32 %v1059, 0.0
    %v1130 = vmax.f32 %v1064, 0.0
    %v1131 = vmax.f32 %v1069, 0.0
    %v1132 = vmax.f32 %v1074, 0.0
    %v1133 = vmax.f32 %v1079, 0.0
    %v1134 = vmax.f32 %v1084, 0.0
    %v1135 = vmax.f32 %v1089, 0.0
    %v1136 = vmax.f32 %v1094, 0.0
    %v1137 = vmax.f32 %v1099, 0.0
    %v1138 = vmax.f32 %v1104, 0.0
    %v1139 = vmax.f32 %v1109, 0.0
    %v1140 = vmax.f32 %v1114, 0.0
    %v1141 = vmax.f32 %v1119, 0.0
    %v1142 = vmax.f32 %v1124, 0.0
    %s1143 = scalar_lea.vmem [#allocation4], 128
    %v1144 = vld [vmem:[%s1143] sm:$0xff]
    %v1145 = vld [vmem:[%s1143 + $0x8] sm:$0xff]
    %v1146 = vld [vmem:[%s1143 + $0x10] sm:$0xff]
    %v1147 = vld [vmem:[%s1143 + $0x18] sm:$0xff]
    %v1148 = vld [vmem:[%s1143 + $0x20] sm:$0xff]
    %v1149 = vld [vmem:[%s1143 + $0x28] sm:$0xff]
    %v1150 = vld [vmem:[%s1143 + $0x30] sm:$0xff]
    %v1151 = vld [vmem:[%s1143 + $0x38] sm:$0xff]
    %v1152 = vld [vmem:[%s1143 + $0x40] sm:$0xff]
    %v1153 = vld [vmem:[%s1143 + $0x48] sm:$0xff]
    %v1154 = vld [vmem:[%s1143 + $0x50] sm:$0xff]
    %v1155 = vld [vmem:[%s1143 + $0x58] sm:$0xff]
    %v1156 = vld [vmem:[%s1143 + $0x60] sm:$0xff]
    %v1157 = vld [vmem:[%s1143 + $0x68] sm:$0xff]
    %v1158 = vld [vmem:[%s1143 + $0x70] sm:$0xff]
    %v1159 = vld [vmem:[%s1143 + $0x78] sm:$0xff]
    %s1160 = scalar_lea.vmem %s8, 1
    %v1161 = vld [vmem:[%s1160] sm:$0x1]
    %v1163 = vlaneseq
    %v1164 = vshrl.u32 %v1163, 7
    %v1165 = vsub.s32 0, %v1164
    %v1166 = vrot.slane %v1161, %v1165
    %1168 = vmatprep.subr.mxu0 0.0
    %1169 = vmatpush1.msra.mxu0 %v1159
    %1170 = vmatprep.subr.mxu0 0.0
    %1171 = vmatpush1.msra.mxu0 %v1158
    %1172 = vmatprep.subr.mxu0 0.0
    %1173 = vmatpush1.msra.mxu0 %v1157
    %1174 = vmatprep.subr.mxu0 0.0
    %1175 = vmatpush1.msra.mxu0 %v1156
    %1176 = vmatprep.subr.mxu0 0.0
    %1177 = vmatpush1.msra.mxu0 %v1155
    %1178 = vmatprep.subr.mxu0 0.0
    %1179 = vmatpush1.msra.mxu0 %v1154
    %1180 = vmatprep.subr.mxu0 0.0
    %1181 = vmatpush1.msra.mxu0 %v1153
    %1182 = vmatprep.subr.mxu0 0.0
    %1183 = vmatpush1.msra.mxu0 %v1152
    %1184 = vmatprep.subr.mxu0 0.0
    %1185 = vmatpush1.msra.mxu0 %v1151
    %1186 = vmatprep.subr.mxu0 0.0
    %1187 = vmatpush1.msra.mxu0 %v1150
    %1188 = vmatprep.subr.mxu0 0.0
    %1189 = vmatpush1.msra.mxu0 %v1149
    %1190 = vmatprep.subr.mxu0 0.0
    %1191 = vmatpush1.msra.mxu0 %v1148
    %1192 = vmatprep.subr.mxu0 0.0
    %1193 = vmatpush1.msra.mxu0 %v1147
    %1194 = vmatprep.subr.mxu0 0.0
    %1195 = vmatpush1.msra.mxu0 %v1146
    %1196 = vmatprep.subr.mxu0 0.0
    %1197 = vmatpush1.msra.mxu0 %v1145
    %1198 = vmatprep.subr.mxu0 0.0
    %1199 = vmatpush1.msra.mxu0 %v1144
    %1200 = vmatprep.subr.mxu0 0.0
    %1201 = vmatpush2.msra.mxu0 0.0
    %1202 = vmatprep.subr.mxu0 0.0
    %1203 = vmatpush2.msra.mxu0 0.0
    %1204 = vmatprep.subr.mxu0 0.0
    %1205 = vmatpush2.msra.mxu0 0.0
    %1206 = vmatprep.subr.mxu0 0.0
    %1207 = vmatpush2.msra.mxu0 0.0
    %1208 = vmatprep.subr.mxu0 0.0
    %1209 = vmatpush2.msra.mxu0 0.0
    %1210 = vmatprep.subr.mxu0 0.0
    %1211 = vmatpush2.msra.mxu0 0.0
    %1212 = vmatprep.subr.mxu0 0.0
    %1213 = vmatpush2.msra.mxu0 0.0
    %1214 = vmatprep.subr.mxu0 0.0
    %1215 = vmatpush2.msra.mxu0 0.0
    %1216 = vmatprep.subr.mxu0 0.0
    %1217 = vmatpush2.msra.mxu0 0.0
    %1218 = vmatprep.subr.mxu0 0.0
    %1219 = vmatpush2.msra.mxu0 0.0
    %1220 = vmatprep.subr.mxu0 0.0
    %1221 = vmatpush2.msra.mxu0 0.0
    %1222 = vmatprep.subr.mxu0 0.0
    %1223 = vmatpush2.msra.mxu0 0.0
    %1224 = vmatprep.subr.mxu0 0.0
    %1225 = vmatpush2.msra.mxu0 0.0
    %1226 = vmatprep.subr.mxu0 0.0
    %1227 = vmatpush2.msra.mxu0 0.0
    %1228 = vmatprep.subr.mxu0 0.0
    %1229 = vmatpush2.msra.mxu0 0.0
    %1230 = vmatprep.subr.mxu0 0.0
    %1231 = vmatpush2.msra.mxu0 0.0
    %1232 = vmatprep.mubr.f32.mxu0 0.0
    %1233 = vmatmul.mubr.f32.gmra.mxu0 %v1127
    %v1234 = vpop.f32.mrf.mxu0
    %v1235 = vadd.f32 %v1166, %v1234
    %v1236 = vpop.f32.mrf.mxu0
    %1237 = vmatprep.mubr.f32.mxu0 0.0
    %1238 = vmatmul.mubr.f32.gmra.mxu0 %v1128
    %v1239 = vpop.f32.mrf.mxu0
    %v1240 = vadd.f32 %v1166, %v1239
    %v1241 = vpop.f32.mrf.mxu0
    %1242 = vmatprep.mubr.f32.mxu0 0.0
    %1243 = vmatmul.mubr.f32.gmra.mxu0 %v1129
    %v1244 = vpop.f32.mrf.mxu0
    %v1245 = vadd.f32 %v1166, %v1244
    %v1246 = vpop.f32.mrf.mxu0
    %1247 = vmatprep.mubr.f32.mxu0 0.0
    %1248 = vmatmul.mubr.f32.gmra.mxu0 %v1130
    %v1249 = vpop.f32.mrf.mxu0
    %v1250 = vadd.f32 %v1166, %v1249
    %v1251 = vpop.f32.mrf.mxu0
    %1252 = vmatprep.mubr.f32.mxu0 0.0
    %1253 = vmatmul.mubr.f32.gmra.mxu0 %v1131
    %v1254 = vpop.f32.mrf.mxu0
    %v1255 = vadd.f32 %v1166, %v1254
    %v1256 = vpop.f32.mrf.mxu0
    %1257 = vmatprep.mubr.f32.mxu0 0.0
    %1258 = vmatmul.mubr.f32.gmra.mxu0 %v1132
    %v1259 = vpop.f32.mrf.mxu0
    %v1260 = vadd.f32 %v1166, %v1259
    %v1261 = vpop.f32.mrf.mxu0
    %1262 = vmatprep.mubr.f32.mxu0 0.0
    %1263 = vmatmul.mubr.f32.gmra.mxu0 %v1133
    %v1264 = vpop.f32.mrf.mxu0
    %v1265 = vadd.f32 %v1166, %v1264
    %v1266 = vpop.f32.mrf.mxu0
    %1267 = vmatprep.mubr.f32.mxu0 0.0
    %1268 = vmatmul.mubr.f32.gmra.mxu0 %v1134
    %v1269 = vpop.f32.mrf.mxu0
    %v1270 = vadd.f32 %v1166, %v1269
    %v1271 = vpop.f32.mrf.mxu0
    %1272 = vmatprep.mubr.f32.mxu0 0.0
    %1273 = vmatmul.mubr.f32.gmra.mxu0 %v1135
    %v1274 = vpop.f32.mrf.mxu0
    %v1275 = vadd.f32 %v1166, %v1274
    %v1276 = vpop.f32.mrf.mxu0
    %1277 = vmatprep.mubr.f32.mxu0 0.0
    %1278 = vmatmul.mubr.f32.gmra.mxu0 %v1136
    %v1279 = vpop.f32.mrf.mxu0
    %v1280 = vadd.f32 %v1166, %v1279
    %v1281 = vpop.f32.mrf.mxu0
    %1282 = vmatprep.mubr.f32.mxu0 0.0
    %1283 = vmatmul.mubr.f32.gmra.mxu0 %v1137
    %v1284 = vpop.f32.mrf.mxu0
    %v1285 = vadd.f32 %v1166, %v1284
    %v1286 = vpop.f32.mrf.mxu0
    %1287 = vmatprep.mubr.f32.mxu0 0.0
    %1288 = vmatmul.mubr.f32.gmra.mxu0 %v1138
    %v1289 = vpop.f32.mrf.mxu0
    %v1290 = vadd.f32 %v1166, %v1289
    %v1291 = vpop.f32.mrf.mxu0
    %1292 = vmatprep.mubr.f32.mxu0 0.0
    %1293 = vmatmul.mubr.f32.gmra.mxu0 %v1139
    %v1294 = vpop.f32.mrf.mxu0
    %v1295 = vadd.f32 %v1166, %v1294
    %v1296 = vpop.f32.mrf.mxu0
    %1297 = vmatprep.mubr.f32.mxu0 0.0
    %1298 = vmatmul.mubr.f32.gmra.mxu0 %v1140
    %v1299 = vpop.f32.mrf.mxu0
    %v1300 = vadd.f32 %v1166, %v1299
    %v1301 = vpop.f32.mrf.mxu0
    %1302 = vmatprep.mubr.f32.mxu0 0.0
    %1303 = vmatmul.mubr.f32.gmra.mxu0 %v1141
    %v1304 = vpop.f32.mrf.mxu0
    %v1305 = vadd.f32 %v1166, %v1304
    %v1306 = vpop.f32.mrf.mxu0
    %1307 = vmatprep.mubr.f32.mxu0 0.0
    %1308 = vmatmul.mubr.f32.gmra.mxu0 %v1142
    %v1309 = vpop.f32.mrf.mxu0
    %v1310 = vadd.f32 %v1166, %v1309
    %v1311 = vpop.f32.mrf.mxu0
    %1312 = vdwg.mxu0
    %v1313 = vmax.f32 %v1235, 0.0
    %v1314 = vmax.f32 %v1240, 0.0
    %v1315 = vmax.f32 %v1245, 0.0
    %v1316 = vmax.f32 %v1250, 0.0
    %v1317 = vmax.f32 %v1255, 0.0
    %v1318 = vmax.f32 %v1260, 0.0
    %v1319 = vmax.f32 %v1265, 0.0
    %v1320 = vmax.f32 %v1270, 0.0
    %v1321 = vmax.f32 %v1275, 0.0
    %v1322 = vmax.f32 %v1280, 0.0
    %v1323 = vmax.f32 %v1285, 0.0
    %v1324 = vmax.f32 %v1290, 0.0
    %v1325 = vmax.f32 %v1295, 0.0
    %v1326 = vmax.f32 %v1300, 0.0
    %v1327 = vmax.f32 %v1305, 0.0
    %v1328 = vmax.f32 %v1310, 0.0
    %v1329 = vld [vmem:[%s1] sm:$0xff]
    %1330 = vmatprep.subr.mxu0 0.0
    %1331 = vmatpush1.msra.mxu0 %v1328
    %1332 = vmatprep.subr.mxu0 0.0
    %1333 = vmatpush1.msra.mxu0 %v1327
    %1334 = vmatprep.subr.mxu0 0.0
    %1335 = vmatpush1.msra.mxu0 %v1326
    %1336 = vmatprep.subr.mxu0 0.0
    %1337 = vmatpush1.msra.mxu0 %v1325
    %1338 = vmatprep.subr.mxu0 0.0
    %1339 = vmatpush1.msra.mxu0 %v1324
    %1340 = vmatprep.subr.mxu0 0.0
    %1341 = vmatpush1.msra.mxu0 %v1323
    %1342 = vmatprep.subr.mxu0 0.0
    %1343 = vmatpush1.msra.mxu0 %v1322
    %1344 = vmatprep.subr.mxu0 0.0
    %1345 = vmatpush1.msra.mxu0 %v1321
    %1346 = vmatprep.subr.mxu0 0.0
    %1347 = vmatpush1.msra.mxu0 %v1320
    %1348 = vmatprep.subr.mxu0 0.0
    %1349 = vmatpush1.msra.mxu0 %v1319
    %1350 = vmatprep.subr.mxu0 0.0
    %1351 = vmatpush1.msra.mxu0 %v1318
    %1352 = vmatprep.subr.mxu0 0.0
    %1353 = vmatpush1.msra.mxu0 %v1317
    %1354 = vmatprep.subr.mxu0 0.0
    %1355 = vmatpush1.msra.mxu0 %v1316
    %1356 = vmatprep.subr.mxu0 0.0
    %1357 = vmatpush1.msra.mxu0 %v1315
    %1358 = vmatprep.subr.mxu0 0.0
    %1359 = vmatpush1.msra.mxu0 %v1314
    %1360 = vmatprep.subr.mxu0 0.0
    %1361 = vmatpush1.msra.mxu0 %v1313
    %1362 = vmatprep.subr.mxu0 0.0
    %1363 = vmatpush2.msra.mxu0 0.0
    %1364 = vmatprep.subr.mxu0 0.0
    %1365 = vmatpush2.msra.mxu0 0.0
    %1366 = vmatprep.subr.mxu0 0.0
    %1367 = vmatpush2.msra.mxu0 0.0
    %1368 = vmatprep.subr.mxu0 0.0
    %1369 = vmatpush2.msra.mxu0 0.0
    %1370 = vmatprep.subr.mxu0 0.0
    %1371 = vmatpush2.msra.mxu0 0.0
    %1372 = vmatprep.subr.mxu0 0.0
    %1373 = vmatpush2.msra.mxu0 0.0
    %1374 = vmatprep.subr.mxu0 0.0
    %1375 = vmatpush2.msra.mxu0 0.0
    %1376 = vmatprep.subr.mxu0 0.0
    %1377 = vmatpush2.msra.mxu0 0.0
    %1378 = vmatprep.subr.mxu0 0.0
    %1379 = vmatpush2.msra.mxu0 0.0
    %1380 = vmatprep.subr.mxu0 0.0
    %1381 = vmatpush2.msra.mxu0 0.0
    %1382 = vmatprep.subr.mxu0 0.0
    %1383 = vmatpush2.msra.mxu0 0.0
    %1384 = vmatprep.subr.mxu0 0.0
    %1385 = vmatpush2.msra.mxu0 0.0
    %1386 = vmatprep.subr.mxu0 0.0
    %1387 = vmatpush2.msra.mxu0 0.0
    %1388 = vmatprep.subr.mxu0 0.0
    %1389 = vmatpush2.msra.mxu0 0.0
    %1390 = vmatprep.subr.mxu0 0.0
    %1391 = vmatpush2.msra.mxu0 0.0
    %1392 = vmatprep.subr.mxu0 0.0
    %1393 = vmatpush2.msra.mxu0 0.0
    %1394 = vmatprep.mubr.f32.mxu0 0.0
    %1395 = vmatmul.mubr.f32.gmra.mxu0 %v1329
    %v1396 = vpop.f32.mrf.mxu0
    %v1397 = vadd.f32 0.0, %v1396
    %v1398 = vpop.f32.mrf.mxu0
    %1399 = vdwg.mxu0
    %v1400 = vld [vmem:[#allocation6] sm:$0xff]
    %v1401 = vld [vmem:[#allocation6 + $0x8] sm:$0xff]
    %v1402 = vld [vmem:[#allocation6 + $0x10] sm:$0xff]
    %v1403 = vld [vmem:[#allocation6 + $0x18] sm:$0xff]
    %v1404 = vld [vmem:[#allocation6 + $0x20] sm:$0xff]
    %v1405 = vld [vmem:[#allocation6 + $0x28] sm:$0xff]
    %v1406 = vld [vmem:[#allocation6 + $0x30] sm:$0xff]
    %v1407 = vld [vmem:[#allocation6 + $0x38] sm:$0xff]
    %v1408 = vld [vmem:[#allocation6 + $0x40] sm:$0xff]
    %v1409 = vld [vmem:[#allocation6 + $0x48] sm:$0xff]
    %v1410 = vld [vmem:[#allocation6 + $0x50] sm:$0xff]
    %v1411 = vld [vmem:[#allocation6 + $0x58] sm:$0xff]
    %v1412 = vld [vmem:[#allocation6 + $0x60] sm:$0xff]
    %v1413 = vld [vmem:[#allocation6 + $0x68] sm:$0xff]
    %v1414 = vld [vmem:[#allocation6 + $0x70] sm:$0xff]
    %v1415 = vld [vmem:[#allocation6 + $0x78] sm:$0xff]
    %v1416 = vld [vmem:[%s10] sm:$0x1]
    %v1418 = vlaneseq
    %v1419 = vshrl.u32 %v1418, 7
    %v1420 = vsub.s32 0, %v1419
    %v1421 = vrot.slane %v1416, %v1420
    %1423 = vmatprep.subr.mxu0 0.0
    %1424 = vmatpush1.msra.mxu0 %v1415
    %1425 = vmatprep.subr.mxu0 0.0
    %1426 = vmatpush1.msra.mxu0 %v1414
    %1427 = vmatprep.subr.mxu0 0.0
    %1428 = vmatpush1.msra.mxu0 %v1413
    %1429 = vmatprep.subr.mxu0 0.0
    %1430 = vmatpush1.msra.mxu0 %v1412
    %1431 = vmatprep.subr.mxu0 0.0
    %1432 = vmatpush1.msra.mxu0 %v1411
    %1433 = vmatprep.subr.mxu0 0.0
    %1434 = vmatpush1.msra.mxu0 %v1410
    %1435 = vmatprep.subr.mxu0 0.0
    %1436 = vmatpush1.msra.mxu0 %v1409
    %1437 = vmatprep.subr.mxu0 0.0
    %1438 = vmatpush1.msra.mxu0 %v1408
    %1439 = vmatprep.subr.mxu0 0.0
    %1440 = vmatpush1.msra.mxu0 %v1407
    %1441 = vmatprep.subr.mxu0 0.0
    %1442 = vmatpush1.msra.mxu0 %v1406
    %1443 = vmatprep.subr.mxu0 0.0
    %1444 = vmatpush1.msra.mxu0 %v1405
    %1445 = vmatprep.subr.mxu0 0.0
    %1446 = vmatpush1.msra.mxu0 %v1404
    %1447 = vmatprep.subr.mxu0 0.0
    %1448 = vmatpush1.msra.mxu0 %v1403
    %1449 = vmatprep.subr.mxu0 0.0
    %1450 = vmatpush1.msra.mxu0 %v1402
    %1451 = vmatprep.subr.mxu0 0.0
    %1452 = vmatpush1.msra.mxu0 %v1401
    %1453 = vmatprep.subr.mxu0 0.0
    %1454 = vmatpush1.msra.mxu0 %v1400
    %1455 = vmatprep.subr.mxu0 0.0
    %1456 = vmatpush2.msra.mxu0 0.0
    %1457 = vmatprep.subr.mxu0 0.0
    %1458 = vmatpush2.msra.mxu0 0.0
    %1459 = vmatprep.subr.mxu0 0.0
    %1460 = vmatpush2.msra.mxu0 0.0
    %1461 = vmatprep.subr.mxu0 0.0
    %1462 = vmatpush2.msra.mxu0 0.0
    %1463 = vmatprep.subr.mxu0 0.0
    %1464 = vmatpush2.msra.mxu0 0.0
    %1465 = vmatprep.subr.mxu0 0.0
    %1466 = vmatpush2.msra.mxu0 0.0
    %1467 = vmatprep.subr.mxu0 0.0
    %1468 = vmatpush2.msra.mxu0 0.0
    %1469 = vmatprep.subr.mxu0 0.0
    %1470 = vmatpush2.msra.mxu0 0.0
    %1471 = vmatprep.subr.mxu0 0.0
    %1472 = vmatpush2.msra.mxu0 0.0
    %1473 = vmatprep.subr.mxu0 0.0
    %1474 = vmatpush2.msra.mxu0 0.0
    %1475 = vmatprep.subr.mxu0 0.0
    %1476 = vmatpush2.msra.mxu0 0.0
    %1477 = vmatprep.subr.mxu0 0.0
    %1478 = vmatpush2.msra.mxu0 0.0
    %1479 = vmatprep.subr.mxu0 0.0
    %1480 = vmatpush2.msra.mxu0 0.0
    %1481 = vmatprep.subr.mxu0 0.0
    %1482 = vmatpush2.msra.mxu0 0.0
    %1483 = vmatprep.subr.mxu0 0.0
    %1484 = vmatpush2.msra.mxu0 0.0
    %1485 = vmatprep.subr.mxu0 0.0
    %1486 = vmatpush2.msra.mxu0 0.0
    %1487 = vmatprep.mubr.f32.mxu0 0.0
    %1488 = vmatmul.mubr.f32.gmra.mxu0 %v1397
    %v1489 = vpop.f32.mrf.mxu0
    %v1490 = vadd.f32 %v1421, %v1489
    %v1491 = vpop.f32.mrf.mxu0
    %1492 = vdwg.mxu0
    %v1493 = vmax.f32 %v1490, 0.0
    %v1494 = vld [vmem:[#allocation7] sm:$0xff]
    %v1495 = vld [vmem:[#allocation7 + $0x8] sm:$0xff]
    %v1496 = vld [vmem:[#allocation7 + $0x10] sm:$0xff]
    %v1497 = vld [vmem:[#allocation7 + $0x18] sm:$0xff]
    %v1498 = vld [vmem:[#allocation7 + $0x20] sm:$0xff]
    %v1499 = vld [vmem:[#allocation7 + $0x28] sm:$0xff]
    %v1500 = vld [vmem:[#allocation7 + $0x30] sm:$0xff]
    %v1501 = vld [vmem:[#allocation7 + $0x38] sm:$0xff]
    %v1502 = vld [vmem:[#allocation7 + $0x40] sm:$0xff]
    %v1503 = vld [vmem:[#allocation7 + $0x48] sm:$0xff]
    %v1504 = vld [vmem:[#allocation7 + $0x50] sm:$0xff]
    %v1505 = vld [vmem:[#allocation7 + $0x58] sm:$0xff]
    %v1506 = vld [vmem:[#allocation7 + $0x60] sm:$0xff]
    %v1507 = vld [vmem:[#allocation7 + $0x68] sm:$0xff]
    %v1508 = vld [vmem:[#allocation7 + $0x70] sm:$0xff]
    %v1509 = vld [vmem:[#allocation7 + $0x78] sm:$0xff]
    %v1510 = vld [vmem:[%s12] sm:$0x1]
    %v1512 = vlaneseq
    %v1513 = vshrl.u32 %v1512, 7
    %v1514 = vsub.s32 0, %v1513
    %v1515 = vrot.slane %v1510, %v1514
    %1517 = vmatprep.subr.mxu0 0.0
    %1518 = vmatpush1.msra.mxu0 %v1509
    %1519 = vmatprep.subr.mxu0 0.0
    %1520 = vmatpush1.msra.mxu0 %v1508
    %1521 = vmatprep.subr.mxu0 0.0
    %1522 = vmatpush1.msra.mxu0 %v1507
    %1523 = vmatprep.subr.mxu0 0.0
    %1524 = vmatpush1.msra.mxu0 %v1506
    %1525 = vmatprep.subr.mxu0 0.0
    %1526 = vmatpush1.msra.mxu0 %v1505
    %1527 = vmatprep.subr.mxu0 0.0
    %1528 = vmatpush1.msra.mxu0 %v1504
    %1529 = vmatprep.subr.mxu0 0.0
    %1530 = vmatpush1.msra.mxu0 %v1503
    %1531 = vmatprep.subr.mxu0 0.0
    %1532 = vmatpush1.msra.mxu0 %v1502
    %1533 = vmatprep.subr.mxu0 0.0
    %1534 = vmatpush1.msra.mxu0 %v1501
    %1535 = vmatprep.subr.mxu0 0.0
    %1536 = vmatpush1.msra.mxu0 %v1500
    %1537 = vmatprep.subr.mxu0 0.0
    %1538 = vmatpush1.msra.mxu0 %v1499
    %1539 = vmatprep.subr.mxu0 0.0
    %1540 = vmatpush1.msra.mxu0 %v1498
    %1541 = vmatprep.subr.mxu0 0.0
    %1542 = vmatpush1.msra.mxu0 %v1497
    %1543 = vmatprep.subr.mxu0 0.0
    %1544 = vmatpush1.msra.mxu0 %v1496
    %1545 = vmatprep.subr.mxu0 0.0
    %1546 = vmatpush1.msra.mxu0 %v1495
    %1547 = vmatprep.subr.mxu0 0.0
    %1548 = vmatpush1.msra.mxu0 %v1494
    %1549 = vmatprep.subr.mxu0 0.0
    %1550 = vmatpush2.msra.mxu0 0.0
    %1551 = vmatprep.subr.mxu0 0.0
    %1552 = vmatpush2.msra.mxu0 0.0
    %1553 = vmatprep.subr.mxu0 0.0
    %1554 = vmatpush2.msra.mxu0 0.0
    %1555 = vmatprep.subr.mxu0 0.0
    %1556 = vmatpush2.msra.mxu0 0.0
    %1557 = vmatprep.subr.mxu0 0.0
    %1558 = vmatpush2.msra.mxu0 0.0
    %1559 = vmatprep.subr.mxu0 0.0
    %1560 = vmatpush2.msra.mxu0 0.0
    %1561 = vmatprep.subr.mxu0 0.0
    %1562 = vmatpush2.msra.mxu0 0.0
    %1563 = vmatprep.subr.mxu0 0.0
    %1564 = vmatpush2.msra.mxu0 0.0
    %1565 = vmatprep.subr.mxu0 0.0
    %1566 = vmatpush2.msra.mxu0 0.0
    %1567 = vmatprep.subr.mxu0 0.0
    %1568 = vmatpush2.msra.mxu0 0.0
    %1569 = vmatprep.subr.mxu0 0.0
    %1570 = vmatpush2.msra.mxu0 0.0
    %1571 = vmatprep.subr.mxu0 0.0
    %1572 = vmatpush2.msra.mxu0 0.0
    %1573 = vmatprep.subr.mxu0 0.0
    %1574 = vmatpush2.msra.mxu0 0.0
    %1575 = vmatprep.subr.mxu0 0.0
    %1576 = vmatpush2.msra.mxu0 0.0
    %1577 = vmatprep.subr.mxu0 0.0
    %1578 = vmatpush2.msra.mxu0 0.0
    %1579 = vmatprep.subr.mxu0 0.0
    %1580 = vmatpush2.msra.mxu0 0.0
    %1581 = vmatprep.mubr.f32.mxu0 0.0
    %1582 = vmatmul.mubr.f32.gmra.mxu0 %v1493
    %v1583 = vpop.f32.mrf.mxu0
    %v1584 = vadd.f32 %v1515, %v1583
    %v1585 = vpop.f32.mrf.mxu0
    %1586 = vdwg.mxu0
    %v1587 = vlaneseq
    %v1588 = vand.u32 %v1587, 127
    %vm1589 = vcmp.lt.s32.totalorder %v1588, 4
    %v1590 = vsel %vm1589, %v1584, -1e+30
    %1591 = vmax.xlane.f32.xlu0 %v1590
    %v1592 = vpop.xlane.xlu0 %1591
    %v1593 = vsub.f32 %v1590, %v1592
    %v1594 = vmul.f32 %v1593, 1.442695
    %v1595 = vpow.pop %v1594
    %v1596 = vsel %vm1589, %v1595, 0.0
    %1597 = vadd.xlane.f32.xlu0 %v1596
    %v1598 = vpop.xlane.xlu0 %1597
    %v1599 = vlog2.pop %v1598
    %v1600 = vmul.f32 %v1599, 0.6931472
    %v1601 = vsub.f32 %v1593, %v1600
    %1602 = vst [vmem:[%s13] sm:$0xff] %v1601
    // Predicated region
    $region70: #{gin_forward.1} parent=1 // pred_check
      _
    $region71: #{gin_forward.1} parent=1 // pred_check_branch
      %1604 = sbr.rel (0) target = $region73
    $region72: #{gin_forward.1} parent=1 // pred_region
      _
    $region73: #{gin_forward.1} parent=1 // pred_fallthru
      _
    // Predicated region
    $region74: #{gin_forward.1} parent=1 // pred_check
      _
    $region75: #{gin_forward.1} parent=1 // pred_check_branch
      %1606 = sbr.rel (0) target = $region77
    $region76: #{gin_forward.1} parent=1 // pred_region
      _
    $region77: #{gin_forward.1} parent=1 // pred_fallthru
      _
    %1607 = vsyncpa [#allocation3], 1
    %1608 = vsyncpa [#allocation5], 1
    %1609 = vsyncpa [#allocation8], 1

</llo_original>
